<compile_context>
chip_gen: v6e
topology: v6e:2x2x1
jax: 0.10.0
libtpu: 0.0.40
codegen_flags: <defaults>
</compile_context>

<pallas_src>
import jax
import jax.numpy as jnp
from jax import lax
from jax.experimental import pallas as pl
from jax.experimental.pallas import tpu as pltpu

EPS = 1e-5
NEG_SLOPE = 0.01  # F.leaky_relu default


def _leaky_relu(x):
    return jnp.where(x > 0, x, NEG_SLOPE * x)


# ----------------------------- tiling / VMEM sizing -----------------------------
def _vmem_limit_bytes():
    cap = 64 * 1024 * 1024  # conservative default (v7x per-TC VMEM)
    try:
        info = pltpu.get_tpu_info()
        cap = int(getattr(info, "vmem_capacity_bytes", cap)) or cap
    except Exception:
        pass
    # v5e/v6e (128 MiB physical) -> 96 MiB scoped budget; v7x (64 MiB) -> 48 MiB.
    return min(cap * 3 // 4, 96 * 1024 * 1024)


def _choose_tiling(C, L, vmem_limit):
    """Pick (L_pad, TL): L_pad a multiple of 128, TL a multiple of 128 dividing L_pad."""
    # Worst-case per-step VMEM (Pass C): x tile + out tile double-buffered in f32 (16*C*TL),
    # ~3 f32 temporaries h1/y1/h2 (12*C*TL), both (C,C) weights double-buffered (16*C^2),
    # plus fixed headroom.
    fixed = 16 * C * C + (2 << 20)
    tl_budget = max((vmem_limit - fixed) // (28 * C), 128)
    # Cap each streamed x tile at ~8 MiB; pipeline efficiency plateaus above that.
    tl_cap = min(tl_budget, max((8 << 20) // (4 * C), 128))
    tl_cap = max((tl_cap // 128) * 128, 128)
    L_pad = -(-L // 128) * 128
    TL = 128
    t = 256
    while t <= min(tl_cap, L_pad):
        if L_pad % t == 0:
            TL = t
        t += 128
    return L_pad, TL


# ---------- Pass A: BN1 batch statistics (per-channel sum / sumsq of conv1(x)) ----------
def _make_stats1_kernel(TL, L_valid, needs_mask):
    def kernel(x_ref, w1_ref, s_ref, ss_ref):
        @pl.when(pl.program_id(1) == 0)
        def _init():
            s_ref[...] = jnp.zeros_like(s_ref)
            ss_ref[...] = jnp.zeros_like(ss_ref)

        # 1x1 conv over channels == (C, C) @ (C, TL); conv bias omitted (cancels in BN).
        h1 = jnp.dot(w1_ref[...], x_ref[...], preferred_element_type=jnp.float32)
        if needs_mask:
            col = pl.program_id(1) * TL + lax.broadcasted_iota(jnp.int32, h1.shape, 1)
            h1 = jnp.where(col < L_valid, h1, 0.0)
        s_ref[...] += jnp.sum(h1, axis=1, keepdims=True)
        ss_ref[...] += jnp.sum(h1 * h1, axis=1, keepdims=True)

    return kernel


# ---------- Pass B: BN2 batch statistics of conv2(leaky(BN1(conv1(x)))); no h2 store ----------
def _make_stats2_kernel(TL, L_valid, needs_mask):
    def kernel(x_ref, w1_ref, w2_ref, sc1_ref, sh1_ref, s_ref, ss_ref):
        @pl.when(pl.program_id(1) == 0)
        def _init():
            s_ref[...] = jnp.zeros_like(s_ref)
            ss_ref[...] = jnp.zeros_like(ss_ref)

        h1 = jnp.dot(w1_ref[...], x_ref[...], preferred_element_type=jnp.float32)
        y1 = _leaky_relu(h1 * sc1_ref[...] + sh1_ref[...])  # BN1 folded into one FMA
        h2 = jnp.dot(w2_ref[...], y1, preferred_element_type=jnp.float32)
        if needs_mask:
            col = pl.program_id(1) * TL + lax.broadcasted_iota(jnp.int32, h2.shape, 1)
            h2 = jnp.where(col < L_valid, h2, 0.0)
        s_ref[...] += jnp.sum(h2, axis=1, keepdims=True)
        ss_ref[...] += jnp.sum(h2 * h2, axis=1, keepdims=True)

    return kernel


# ---------- Pass C: recompute conv1/BN1/leaky/conv2, apply BN2, residual, final leaky ----------
def _apply_kernel(x_ref, w1_ref, w2_ref, sc1_ref, sh1_ref, sc2_ref, sh2_ref, o_ref):
    x = x_ref[...].astype(jnp.float32)
    h1 = jnp.dot(w1_ref[...], x, preferred_element_type=jnp.float32)
    y1 = _leaky_relu(h1 * sc1_ref[...] + sh1_ref[...])
    h2 = jnp.dot(w2_ref[...], y1, preferred_element_type=jnp.float32)
    y2 = h2 * sc2_ref[...] + sh2_ref[...]                    # BN2 folded into one FMA
    o_ref[...] = _leaky_relu(y2 + x).astype(o_ref.dtype)     # residual + leaky


def basic_block1d(x_ncl, params):
    """x_ncl: (N, C, L). params: conv/bn parameters of BasicBlock1D (training-mode BN)."""
    N, C, L = x_ncl.shape
    vmem_limit = _vmem_limit_bytes()
    L_pad, TL = _choose_tiling(C, L, vmem_limit)
    needs_mask = L_pad != L
    x_p = jnp.pad(x_ncl, ((0, 0), (0, 0), (0, L_pad - L))) if needs_mask else x_ncl
    grid = (N, L_pad // TL)

    w1 = params["w1"].astype(jnp.float32)
    w2 = params["w2"].astype(jnp.float32)
    g1 = params["g1"].reshape(C, 1).astype(jnp.float32)
    be1 = params["be1"].reshape(C, 1).astype(jnp.float32)
    g2 = params["g2"].reshape(C, 1).astype(jnp.float32)
    be2 = params["be2"].reshape(C, 1).astype(jnp.float32)
    # NOTE: params["b1"] / params["b2"] intentionally unused: per-channel constant biases are
    # removed exactly by the batch-mean subtraction of training-mode BatchNorm.
    # TODO(synk): this cancellation does not hold for eval-mode (running-stat) BatchNorm.

    x_spec = pl.BlockSpec((None, C, TL), lambda n, l: (n, 0, l))
    mat_spec = pl.BlockSpec((C, C), lambda n, l: (0, 0))
    vec_spec = pl.BlockSpec((C, 1), lambda n, l: (0, 0))
    stat_spec = pl.BlockSpec((None, C, 1), lambda n, l: (n, 0, 0))   # per-batch partials
    stat_shape = jax.ShapeDtypeStruct((N, C, 1), jnp.float32)

    acc_params = pltpu.CompilerParams(
        dimension_semantics=("parallel", "arbitrary"),   # per-n accumulators -> N stays parallel
        vmem_limit_bytes=vmem_limit)
    map_params = pltpu.CompilerParams(
        dimension_semantics=("parallel", "parallel"),    # pure map pass
        vmem_limit_bytes=vmem_limit)

    inv_m = 1.0 / float(N * L)

    # Pass A -------------------------------------------------------------------------------
    s1, ss1 = pl.pallas_call(
        _make_stats1_kernel(TL, L, needs_mask),
        grid=grid,
        in_specs=[x_spec, mat_spec],
        out_specs=(stat_spec, stat_spec),
        out_shape=(stat_shape, stat_shape),
        compiler_params=acc_params,
    )(x_p, w1)
    mu1 = jnp.sum(s1, axis=0) * inv_m
    # TODO(synk): one-pass E[x^2]-E[x]^2 can cancel if |mean| >> std; switch to a shifted
    #             accumulation if inputs with large per-channel means are expected.
    var1 = jnp.maximum(jnp.sum(ss1, axis=0) * inv_m - mu1 * mu1, 0.0)
    sc1 = g1 * lax.rsqrt(var1 + EPS)
    sh1 = be1 - mu1 * sc1

    # Pass B -------------------------------------------------------------------------------
    s2, ss2 = pl.pallas_call(
        _make_stats2_kernel(TL, L, needs_mask),
        grid=grid,
        in_specs=[x_spec, mat_spec, mat_spec, vec_spec, vec_spec],
        out_specs=(stat_spec, stat_spec),
        out_shape=(stat_shape, stat_shape),
        compiler_params=acc_params,
    )(x_p, w1, w2, sc1, sh1)
    mu2 = jnp.sum(s2, axis=0) * inv_m
    var2 = jnp.maximum(jnp.sum(ss2, axis=0) * inv_m - mu2 * mu2, 0.0)
    sc2 = g2 * lax.rsqrt(var2 + EPS)
    sh2 = be2 - mu2 * sc2

    # Pass C -------------------------------------------------------------------------------
    out = pl.pallas_call(
        _apply_kernel,
        grid=grid,
        in_specs=[x_spec, mat_spec, mat_spec, vec_spec, vec_spec, vec_spec, vec_spec],
        out_specs=x_spec,
        out_shape=jax.ShapeDtypeStruct((N, C, L_pad), x_ncl.dtype),
        compiler_params=map_params,
    )(x_p, w1, w2, sc1, sh1, sc2, sh2)

    return out[:, :, :L] if needs_mask else out


def _reference(x_ncl, params):
    """Pure-JAX reference mirroring the PyTorch forward (training-mode BN, with conv biases)."""
    def conv1x1(x, w, b):  # x: (N, C, L)
        return jnp.einsum("ncl,oc->nol", x, w) + b[None, :, None]

    def bn(x, g, be):
        mu = jnp.mean(x, axis=(0, 2), keepdims=True)
        var = jnp.mean((x - mu) ** 2, axis=(0, 2), keepdims=True)
        return (x - mu) / jnp.sqrt(var + EPS) * g[None, :, None] + be[None, :, None]

    res = x_ncl
    h = _leaky_relu(bn(conv1x1(x_ncl, params["w1"], params["b1"]), params["g1"], params["be1"]))
    h = bn(conv1x1(h, params["w2"], params["b2"]), params["g2"], params["be2"])
    return _leaky_relu(h + res)


if __name__ == "__main__":
    N, C, L = 2, 4, 16
    key = jax.random.PRNGKey(0)
    kx, kw1, kb1, kw2, kb2 = jax.random.split(key, 5)

    x = jax.random.normal(kx, (N, C, L), dtype=jnp.float32)

    # Shapes match nn.Conv1d(C, C, 1) / nn.BatchNorm1d(C). Biases are nonzero on purpose to
    # exercise the "conv bias cancels in training-mode BN" property.
    params = {
        "w1": jax.random.normal(kw1, (C, C), dtype=jnp.float32) * 0.1,
        "b1": jax.random.normal(kb1, (C,), dtype=jnp.float32) * 0.1,
        "w2": jax.random.normal(kw2, (C, C), dtype=jnp.float32) * 0.1,
        "b2": jax.random.normal(kb2, (C,), dtype=jnp.float32) * 0.1,
        "g1": jnp.ones((C,), dtype=jnp.float32),    # BatchNorm weight init
        "be1": jnp.zeros((C,), dtype=jnp.float32),  # BatchNorm bias init
        "g2": jnp.ones((C,), dtype=jnp.float32),
        "be2": jnp.zeros((C,), dtype=jnp.float32),
    }

    out = jax.block_until_ready(jax.jit(basic_block1d)(x, params))
    ref = _reference(x, params)

    assert out.shape == (N, C, L), out.shape
    err = float(jnp.max(jnp.abs(out - ref)))
    assert jnp.allclose(out, ref, atol=1e-4, rtol=1e-4), err
    print("KERNEL_OK")
</pallas_src>

<mosaic_0001>
module attributes {stable_mosaic.version = 11 : i64} {
  func.func @kernel(%arg0: i32, %arg1: i32, %arg2: memref<1x4x128xf32, #tpu.memory_space<vmem>>, %arg3: memref<4x4xf32, #tpu.memory_space<vmem>>, %arg4: memref<1x4x1xf32, #tpu.memory_space<vmem>>, %arg5: memref<1x4x1xf32, #tpu.memory_space<vmem>>) attributes {dimension_semantics = [#tpu.dimension_semantics<parallel>, #tpu.dimension_semantics<arbitrary>], iteration_bounds = array<i64: 2, 1>, scalar_prefetch = 0 : i64, scratch_operands = 0 : i64, tpu.core_type = #tpu.core_type<tc>, window_params = [{transform_indices = @transform_0, window_bounds = array<i64: 1, 4, 128>}, {pipeline_mode = #tpu.pipeline_mode<synchronous>, transform_indices = @transform_1, window_bounds = array<i64: 4, 4>}, {transform_indices = @transform_2, window_bounds = array<i64: 1, 4, 1>}, {transform_indices = @transform_3, window_bounds = array<i64: 1, 4, 1>}]} {
    %c0_i32 = arith.constant 0 : i32
    %0 = arith.cmpi eq, %arg1, %c0_i32 : i32
    %1 = arith.extui %0 : i1 to i32
    %c0_i32_0 = arith.constant 0 : i32
    %2 = arith.cmpi ne, %1, %c0_i32_0 : i32
    scf.if %2 {
      %cst_20 = arith.constant 0.000000e+00 : f32
      %32 = vector.broadcast %cst_20 : f32 to vector<4x1xf32>
      %c0_21 = arith.constant 0 : index
      %c0_22 = arith.constant 0 : index
      %c0_23 = arith.constant 0 : index
      %33 = vector.load %arg4[%c0_21, %c0_22, %c0_23] : memref<1x4x1xf32, #tpu.memory_space<vmem>>, vector<1x4x1xf32>
      %34 = vector.shape_cast %33 : vector<1x4x1xf32> to vector<4x1xf32>
      %35 = vector.shape_cast %32 : vector<4x1xf32> to vector<1x4x1xf32>
      tpu.vector_store %arg4[%c0_21, %c0_22, %c0_23], %35 {strides = array<i32>} : memref<1x4x1xf32, #tpu.memory_space<vmem>>, vector<1x4x1xf32>,
      %cst_24 = arith.constant 0.000000e+00 : f32
      %36 = vector.broadcast %cst_24 : f32 to vector<4x1xf32>
      %c0_25 = arith.constant 0 : index
      %c0_26 = arith.constant 0 : index
      %c0_27 = arith.constant 0 : index
      %37 = vector.load %arg5[%c0_25, %c0_26, %c0_27] : memref<1x4x1xf32, #tpu.memory_space<vmem>>, vector<1x4x1xf32>
      %38 = vector.shape_cast %37 : vector<1x4x1xf32> to vector<4x1xf32>
      %39 = vector.shape_cast %36 : vector<4x1xf32> to vector<1x4x1xf32>
      tpu.vector_store %arg5[%c0_25, %c0_26, %c0_27], %39 {strides = array<i32>} : memref<1x4x1xf32, #tpu.memory_space<vmem>>, vector<1x4x1xf32>,
    } else {
    }
    %c0 = arith.constant 0 : index
    %c0_1 = arith.constant 0 : index
    %3 = vector.load %arg3[%c0, %c0_1] : memref<4x4xf32, #tpu.memory_space<vmem>>, vector<4x4xf32>
    %c0_2 = arith.constant 0 : index
    %c0_3 = arith.constant 0 : index
    %c0_4 = arith.constant 0 : index
    %4 = vector.load %arg2[%c0_2, %c0_3, %c0_4] : memref<1x4x128xf32, #tpu.memory_space<vmem>>, vector<1x4x128xf32>
    %5 = vector.shape_cast %4 : vector<1x4x128xf32> to vector<4x128xf32>
    %cst = arith.constant dense<0.000000e+00> : vector<4x128xf32>
    %6 = tpu.matmul %3, %5, %cst {dimension_numbers = #tpu.dot_dimension_numbers<[1], [0], [0], [1], [0, 0, 1, 1], [], []>} : vector<4x4xf32>, vector<4x128xf32>, vector<4x128xf32> -> vector<4x128xf32>
    %c128_i32 = arith.constant 128 : i32
    %7 = arith.muli %arg1, %c128_i32 : i32
    %8 = tpu.iota {dimensions = array<i32: 1>} : vector<4x128xi32>
    %9 = vector.broadcast %7 : i32 to vector<4x128xi32>
    %10 = arith.addi %9, %8 : vector<4x128xi32>
    %c16_i32 = arith.constant 16 : i32
    %11 = vector.broadcast %c16_i32 : i32 to vector<4x128xi32>
    %12 = arith.cmpi slt, %10, %11 : vector<4x128xi32>
    %cst_5 = arith.constant 0.000000e+00 : f32
    %13 = vector.broadcast %cst_5 : f32 to vector<4x128xf32>
    %14 = arith.select %12, %6, %13 : vector<4x128xi1>, vector<4x128xf32>
    %c0_6 = arith.constant 0 : index
    %c0_7 = arith.constant 0 : index
    %c0_8 = arith.constant 0 : index
    %15 = vector.load %arg4[%c0_6, %c0_7, %c0_8] : memref<1x4x1xf32, #tpu.memory_space<vmem>>, vector<1x4x1xf32>
    %16 = vector.shape_cast %15 : vector<1x4x1xf32> to vector<4x1xf32>
    %cst_9 = arith.constant dense<0.000000e+00> : vector<4xf32>
    %17 = vector.multi_reduction <add>, %14, %cst_9 [1] : vector<4x128xf32> to vector<4xf32>
    %18 = vector.shape_cast %17 : vector<4xf32> to vector<4x1xf32>
    %19 = arith.addf %16, %18 : vector<4x1xf32>
    %c0_10 = arith.constant 0 : index
    %c0_11 = arith.constant 0 : index
    %c0_12 = arith.constant 0 : index
    %20 = vector.load %arg4[%c0_10, %c0_11, %c0_12] : memref<1x4x1xf32, #tpu.memory_space<vmem>>, vector<1x4x1xf32>
    %21 = vector.shape_cast %20 : vector<1x4x1xf32> to vector<4x1xf32>
    %22 = vector.shape_cast %19 : vector<4x1xf32> to vector<1x4x1xf32>
    tpu.vector_store %arg4[%c0_10, %c0_11, %c0_12], %22 {strides = array<i32>} : memref<1x4x1xf32, #tpu.memory_space<vmem>>, vector<1x4x1xf32>,
    %c0_13 = arith.constant 0 : index
    %c0_14 = arith.constant 0 : index
    %c0_15 = arith.constant 0 : index
    %23 = vector.load %arg5[%c0_13, %c0_14, %c0_15] : memref<1x4x1xf32, #tpu.memory_space<vmem>>, vector<1x4x1xf32>
    %24 = vector.shape_cast %23 : vector<1x4x1xf32> to vector<4x1xf32>
    %25 = arith.mulf %14, %14 : vector<4x128xf32>
    %cst_16 = arith.constant dense<0.000000e+00> : vector<4xf32>
    %26 = vector.multi_reduction <add>, %25, %cst_16 [1] : vector<4x128xf32> to vector<4xf32>
    %27 = vector.shape_cast %26 : vector<4xf32> to vector<4x1xf32>
    %28 = arith.addf %24, %27 : vector<4x1xf32>
    %c0_17 = arith.constant 0 : index
    %c0_18 = arith.constant 0 : index
    %c0_19 = arith.constant 0 : index
    %29 = vector.load %arg5[%c0_17, %c0_18, %c0_19] : memref<1x4x1xf32, #tpu.memory_space<vmem>>, vector<1x4x1xf32>
    %30 = vector.shape_cast %29 : vector<1x4x1xf32> to vector<4x1xf32>
    %31 = vector.shape_cast %28 : vector<4x1xf32> to vector<1x4x1xf32>
    tpu.vector_store %arg5[%c0_17, %c0_18, %c0_19], %31 {strides = array<i32>} : memref<1x4x1xf32, #tpu.memory_space<vmem>>, vector<1x4x1xf32>,
    return
  }
  func.func @transform_0(%arg0: i32, %arg1: i32) -> (i32, i32, i32) {
    %c0_i32 = arith.constant 0 : i32
    %c0_i32_0 = arith.constant 0 : i32
    return %arg0, %c0_i32, %arg1 : i32, i32, i32
  }
  func.func @transform_1(%arg0: i32, %arg1: i32) -> (i32, i32) {
    %c0_i32 = arith.constant 0 : i32
    %c0_i32_0 = arith.constant 0 : i32
    %c0_i32_1 = arith.constant 0 : i32
    return %c0_i32, %c0_i32_0 : i32, i32
  }
  func.func @transform_2(%arg0: i32, %arg1: i32) -> (i32, i32, i32) {
    %c0_i32 = arith.constant 0 : i32
    %c0_i32_0 = arith.constant 0 : i32
    %c0_i32_1 = arith.constant 0 : i32
    return %arg0, %c0_i32, %c0_i32_0 : i32, i32, i32
  }
  func.func @transform_3(%arg0: i32, %arg1: i32) -> (i32, i32, i32) {
    %c0_i32 = arith.constant 0 : i32
    %c0_i32_0 = arith.constant 0 : i32
    %c0_i32_1 = arith.constant 0 : i32
    return %arg0, %c0_i32, %c0_i32_0 : i32, i32, i32
  }
}

module attributes {stable_mosaic.version = 11 : i64} {
  func.func @kernel(%arg0: i32, %arg1: i32, %arg2: memref<1x4x128xf32, #tpu.memory_space<vmem>>, %arg3: memref<4x4xf32, #tpu.memory_space<vmem>>, %arg4: memref<4x4xf32, #tpu.memory_space<vmem>>, %arg5: memref<4x1xf32, #tpu.memory_space<vmem>>, %arg6: memref<4x1xf32, #tpu.memory_space<vmem>>, %arg7: memref<1x4x1xf32, #tpu.memory_space<vmem>>, %arg8: memref<1x4x1xf32, #tpu.memory_space<vmem>>) attributes {dimension_semantics = [#tpu.dimension_semantics<parallel>, #tpu.dimension_semantics<arbitrary>], iteration_bounds = array<i64: 2, 1>, scalar_prefetch = 0 : i64, scratch_operands = 0 : i64, tpu.core_type = #tpu.core_type<tc>, window_params = [{transform_indices = @transform_0, window_bounds = array<i64: 1, 4, 128>}, {pipeline_mode = #tpu.pipeline_mode<synchronous>, transform_indices = @transform_1, window_bounds = array<i64: 4, 4>}, {pipeline_mode = #tpu.pipeline_mode<synchronous>, transform_indices = @transform_2, window_bounds = array<i64: 4, 4>}, {pipeline_mode = #tpu.pipeline_mode<synchronous>, transform_indices = @transform_3, window_bounds = array<i64: 4, 1>}, {pipeline_mode = #tpu.pipeline_mode<synchronous>, transform_indices = @transform_4, window_bounds = array<i64: 4, 1>}, {transform_indices = @transform_5, window_bounds = array<i64: 1, 4, 1>}, {transform_indices = @transform_6, window_bounds = array<i64: 1, 4, 1>}]} {
    %c0_i32 = arith.constant 0 : i32
    %0 = arith.cmpi eq, %arg1, %c0_i32 : i32
    %1 = arith.extui %0 : i1 to i32
    %c0_i32_0 = arith.constant 0 : i32
    %2 = arith.cmpi ne, %1, %c0_i32_0 : i32
    scf.if %2 {
      %cst_29 = arith.constant 0.000000e+00 : f32
      %45 = vector.broadcast %cst_29 : f32 to vector<4x1xf32>
      %c0_30 = arith.constant 0 : index
      %c0_31 = arith.constant 0 : index
      %c0_32 = arith.constant 0 : index
      %46 = vector.load %arg7[%c0_30, %c0_31, %c0_32] : memref<1x4x1xf32, #tpu.memory_space<vmem>>, vector<1x4x1xf32>
      %47 = vector.shape_cast %46 : vector<1x4x1xf32> to vector<4x1xf32>
      %48 = vector.shape_cast %45 : vector<4x1xf32> to vector<1x4x1xf32>
      tpu.vector_store %arg7[%c0_30, %c0_31, %c0_32], %48 {strides = array<i32>} : memref<1x4x1xf32, #tpu.memory_space<vmem>>, vector<1x4x1xf32>,
      %cst_33 = arith.constant 0.000000e+00 : f32
      %49 = vector.broadcast %cst_33 : f32 to vector<4x1xf32>
      %c0_34 = arith.constant 0 : index
      %c0_35 = arith.constant 0 : index
      %c0_36 = arith.constant 0 : index
      %50 = vector.load %arg8[%c0_34, %c0_35, %c0_36] : memref<1x4x1xf32, #tpu.memory_space<vmem>>, vector<1x4x1xf32>
      %51 = vector.shape_cast %50 : vector<1x4x1xf32> to vector<4x1xf32>
      %52 = vector.shape_cast %49 : vector<4x1xf32> to vector<1x4x1xf32>
      tpu.vector_store %arg8[%c0_34, %c0_35, %c0_36], %52 {strides = array<i32>} : memref<1x4x1xf32, #tpu.memory_space<vmem>>, vector<1x4x1xf32>,
    } else {
    }
    %c0 = arith.constant 0 : index
    %c0_1 = arith.constant 0 : index
    %3 = vector.load %arg3[%c0, %c0_1] : memref<4x4xf32, #tpu.memory_space<vmem>>, vector<4x4xf32>
    %c0_2 = arith.constant 0 : index
    %c0_3 = arith.constant 0 : index
    %c0_4 = arith.constant 0 : index
    %4 = vector.load %arg2[%c0_2, %c0_3, %c0_4] : memref<1x4x128xf32, #tpu.memory_space<vmem>>, vector<1x4x128xf32>
    %5 = vector.shape_cast %4 : vector<1x4x128xf32> to vector<4x128xf32>
    %cst = arith.constant dense<0.000000e+00> : vector<4x128xf32>
    %6 = tpu.matmul %3, %5, %cst {dimension_numbers = #tpu.dot_dimension_numbers<[1], [0], [0], [1], [0, 0, 1, 1], [], []>} : vector<4x4xf32>, vector<4x128xf32>, vector<4x128xf32> -> vector<4x128xf32>
    %c0_5 = arith.constant 0 : index
    %c0_6 = arith.constant 0 : index
    %7 = vector.load %arg5[%c0_5, %c0_6] : memref<4x1xf32, #tpu.memory_space<vmem>>, vector<4x1xf32>
    %8 = vector.broadcast %7 : vector<4x1xf32> to vector<4x128xf32>
    %9 = arith.mulf %6, %8 : vector<4x128xf32>
    %c0_7 = arith.constant 0 : index
    %c0_8 = arith.constant 0 : index
    %10 = vector.load %arg6[%c0_7, %c0_8] : memref<4x1xf32, #tpu.memory_space<vmem>>, vector<4x1xf32>
    %11 = vector.broadcast %10 : vector<4x1xf32> to vector<4x128xf32>
    %12 = arith.addf %9, %11 : vector<4x128xf32>
    %cst_9 = arith.constant 0.000000e+00 : f32
    %13 = vector.broadcast %cst_9 : f32 to vector<4x128xf32>
    %14 = arith.cmpf ogt, %12, %13 : vector<4x128xf32>
    %cst_10 = arith.constant 0.00999999977 : f32
    %15 = vector.broadcast %cst_10 : f32 to vector<4x128xf32>
    %16 = arith.mulf %15, %12 : vector<4x128xf32>
    %17 = arith.select %14, %12, %16 : vector<4x128xi1>, vector<4x128xf32>
    %c0_11 = arith.constant 0 : index
    %c0_12 = arith.constant 0 : index
    %18 = vector.load %arg4[%c0_11, %c0_12] : memref<4x4xf32, #tpu.memory_space<vmem>>, vector<4x4xf32>
    %cst_13 = arith.constant dense<0.000000e+00> : vector<4x128xf32>
    %19 = tpu.matmul %18, %17, %cst_13 {dimension_numbers = #tpu.dot_dimension_numbers<[1], [0], [0], [1], [0, 0, 1, 1], [], []>} : vector<4x4xf32>, vector<4x128xf32>, vector<4x128xf32> -> vector<4x128xf32>
    %c128_i32 = arith.constant 128 : i32
    %20 = arith.muli %arg1, %c128_i32 : i32
    %21 = tpu.iota {dimensions = array<i32: 1>} : vector<4x128xi32>
    %22 = vector.broadcast %20 : i32 to vector<4x128xi32>
    %23 = arith.addi %22, %21 : vector<4x128xi32>
    %c16_i32 = arith.constant 16 : i32
    %24 = vector.broadcast %c16_i32 : i32 to vector<4x128xi32>
    %25 = arith.cmpi slt, %23, %24 : vector<4x128xi32>
    %cst_14 = arith.constant 0.000000e+00 : f32
    %26 = vector.broadcast %cst_14 : f32 to vector<4x128xf32>
    %27 = arith.select %25, %19, %26 : vector<4x128xi1>, vector<4x128xf32>
    %c0_15 = arith.constant 0 : index
    %c0_16 = arith.constant 0 : index
    %c0_17 = arith.constant 0 : index
    %28 = vector.load %arg7[%c0_15, %c0_16, %c0_17] : memref<1x4x1xf32, #tpu.memory_space<vmem>>, vector<1x4x1xf32>
    %29 = vector.shape_cast %28 : vector<1x4x1xf32> to vector<4x1xf32>
    %cst_18 = arith.constant dense<0.000000e+00> : vector<4xf32>
    %30 = vector.multi_reduction <add>, %27, %cst_18 [1] : vector<4x128xf32> to vector<4xf32>
    %31 = vector.shape_cast %30 : vector<4xf32> to vector<4x1xf32>
    %32 = arith.addf %29, %31 : vector<4x1xf32>
    %c0_19 = arith.constant 0 : index
    %c0_20 = arith.constant 0 : index
    %c0_21 = arith.constant 0 : index
    %33 = vector.load %arg7[%c0_19, %c0_20, %c0_21] : memref<1x4x1xf32, #tpu.memory_space<vmem>>, vector<1x4x1xf32>
    %34 = vector.shape_cast %33 : vector<1x4x1xf32> to vector<4x1xf32>
    %35 = vector.shape_cast %32 : vector<4x1xf32> to vector<1x4x1xf32>
    tpu.vector_store %arg7[%c0_19, %c0_20, %c0_21], %35 {strides = array<i32>} : memref<1x4x1xf32, #tpu.memory_space<vmem>>, vector<1x4x1xf32>,
    %c0_22 = arith.constant 0 : index
    %c0_23 = arith.constant 0 : index
    %c0_24 = arith.constant 0 : index
    %36 = vector.load %arg8[%c0_22, %c0_23, %c0_24] : memref<1x4x1xf32, #tpu.memory_space<vmem>>, vector<1x4x1xf32>
    %37 = vector.shape_cast %36 : vector<1x4x1xf32> to vector<4x1xf32>
    %38 = arith.mulf %27, %27 : vector<4x128xf32>
    %cst_25 = arith.constant dense<0.000000e+00> : vector<4xf32>
    %39 = vector.multi_reduction <add>, %38, %cst_25 [1] : vector<4x128xf32> to vector<4xf32>
    %40 = vector.shape_cast %39 : vector<4xf32> to vector<4x1xf32>
    %41 = arith.addf %37, %40 : vector<4x1xf32>
    %c0_26 = arith.constant 0 : index
    %c0_27 = arith.constant 0 : index
    %c0_28 = arith.constant 0 : index
    %42 = vector.load %arg8[%c0_26, %c0_27, %c0_28] : memref<1x4x1xf32, #tpu.memory_space<vmem>>, vector<1x4x1xf32>
    %43 = vector.shape_cast %42 : vector<1x4x1xf32> to vector<4x1xf32>
    %44 = vector.shape_cast %41 : vector<4x1xf32> to vector<1x4x1xf32>
    tpu.vector_store %arg8[%c0_26, %c0_27, %c0_28], %44 {strides = array<i32>} : memref<1x4x1xf32, #tpu.memory_space<vmem>>, vector<1x4x1xf32>,
    return
  }
  func.func @transform_0(%arg0: i32, %arg1: i32) -> (i32, i32, i32) {
    %c0_i32 = arith.constant 0 : i32
    %c0_i32_0 = arith.constant 0 : i32
    return %arg0, %c0_i32, %arg1 : i32, i32, i32
  }
  func.func @transform_1(%arg0: i32, %arg1: i32) -> (i32, i32) {
    %c0_i32 = arith.constant 0 : i32
    %c0_i32_0 = arith.constant 0 : i32
    %c0_i32_1 = arith.constant 0 : i32
    return %c0_i32, %c0_i32_0 : i32, i32
  }
  func.func @transform_2(%arg0: i32, %arg1: i32) -> (i32, i32) {
    %c0_i32 = arith.constant 0 : i32
    %c0_i32_0 = arith.constant 0 : i32
    %c0_i32_1 = arith.constant 0 : i32
    return %c0_i32, %c0_i32_0 : i32, i32
  }
  func.func @transform_3(%arg0: i32, %arg1: i32) -> (i32, i32) {
    %c0_i32 = arith.constant 0 : i32
    %c0_i32_0 = arith.constant 0 : i32
    %c0_i32_1 = arith.constant 0 : i32
    return %c0_i32, %c0_i32_0 : i32, i32
  }
  func.func @transform_4(%arg0: i32, %arg1: i32) -> (i32, i32) {
    %c0_i32 = arith.constant 0 : i32
    %c0_i32_0 = arith.constant 0 : i32
    %c0_i32_1 = arith.constant 0 : i32
    return %c0_i32, %c0_i32_0 : i32, i32
  }
  func.func @transform_5(%arg0: i32, %arg1: i32) -> (i32, i32, i32) {
    %c0_i32 = arith.constant 0 : i32
    %c0_i32_0 = arith.constant 0 : i32
    %c0_i32_1 = arith.constant 0 : i32
    return %arg0, %c0_i32, %c0_i32_0 : i32, i32, i32
  }
  func.func @transform_6(%arg0: i32, %arg1: i32) -> (i32, i32, i32) {
    %c0_i32 = arith.constant 0 : i32
    %c0_i32_0 = arith.constant 0 : i32
    %c0_i32_1 = arith.constant 0 : i32
    return %arg0, %c0_i32, %c0_i32_0 : i32, i32, i32
  }
}

module attributes {stable_mosaic.version = 11 : i64} {
  func.func @_apply_kernel(%arg0: i32, %arg1: i32, %arg2: memref<1x4x128xf32, #tpu.memory_space<vmem>>, %arg3: memref<4x4xf32, #tpu.memory_space<vmem>>, %arg4: memref<4x4xf32, #tpu.memory_space<vmem>>, %arg5: memref<4x1xf32, #tpu.memory_space<vmem>>, %arg6: memref<4x1xf32, #tpu.memory_space<vmem>>, %arg7: memref<4x1xf32, #tpu.memory_space<vmem>>, %arg8: memref<4x1xf32, #tpu.memory_space<vmem>>, %arg9: memref<1x4x128xf32, #tpu.memory_space<vmem>>) attributes {dimension_semantics = [#tpu.dimension_semantics<parallel>, #tpu.dimension_semantics<parallel>], iteration_bounds = array<i64: 2, 1>, scalar_prefetch = 0 : i64, scratch_operands = 0 : i64, tpu.core_type = #tpu.core_type<tc>, window_params = [{transform_indices = @transform_0, window_bounds = array<i64: 1, 4, 128>}, {pipeline_mode = #tpu.pipeline_mode<synchronous>, transform_indices = @transform_1, window_bounds = array<i64: 4, 4>}, {pipeline_mode = #tpu.pipeline_mode<synchronous>, transform_indices = @transform_2, window_bounds = array<i64: 4, 4>}, {pipeline_mode = #tpu.pipeline_mode<synchronous>, transform_indices = @transform_3, window_bounds = array<i64: 4, 1>}, {pipeline_mode = #tpu.pipeline_mode<synchronous>, transform_indices = @transform_4, window_bounds = array<i64: 4, 1>}, {pipeline_mode = #tpu.pipeline_mode<synchronous>, transform_indices = @transform_5, window_bounds = array<i64: 4, 1>}, {pipeline_mode = #tpu.pipeline_mode<synchronous>, transform_indices = @transform_6, window_bounds = array<i64: 4, 1>}, {transform_indices = @transform_7, window_bounds = array<i64: 1, 4, 128>}]} {
    %c0 = arith.constant 0 : index
    %c0_0 = arith.constant 0 : index
    %c0_1 = arith.constant 0 : index
    %0 = vector.load %arg2[%c0, %c0_0, %c0_1] : memref<1x4x128xf32, #tpu.memory_space<vmem>>, vector<1x4x128xf32>
    %1 = vector.shape_cast %0 : vector<1x4x128xf32> to vector<4x128xf32>
    %c0_2 = arith.constant 0 : index
    %c0_3 = arith.constant 0 : index
    %2 = vector.load %arg3[%c0_2, %c0_3] : memref<4x4xf32, #tpu.memory_space<vmem>>, vector<4x4xf32>
    %cst = arith.constant dense<0.000000e+00> : vector<4x128xf32>
    %3 = tpu.matmul %2, %1, %cst {dimension_numbers = #tpu.dot_dimension_numbers<[1], [0], [0], [1], [0, 0, 1, 1], [], []>} : vector<4x4xf32>, vector<4x128xf32>, vector<4x128xf32> -> vector<4x128xf32>
    %c0_4 = arith.constant 0 : index
    %c0_5 = arith.constant 0 : index
    %4 = vector.load %arg5[%c0_4, %c0_5] : memref<4x1xf32, #tpu.memory_space<vmem>>, vector<4x1xf32>
    %5 = vector.broadcast %4 : vector<4x1xf32> to vector<4x128xf32>
    %6 = arith.mulf %3, %5 : vector<4x128xf32>
    %c0_6 = arith.constant 0 : index
    %c0_7 = arith.constant 0 : index
    %7 = vector.load %arg6[%c0_6, %c0_7] : memref<4x1xf32, #tpu.memory_space<vmem>>, vector<4x1xf32>
    %8 = vector.broadcast %7 : vector<4x1xf32> to vector<4x128xf32>
    %9 = arith.addf %6, %8 : vector<4x128xf32>
    %cst_8 = arith.constant 0.000000e+00 : f32
    %10 = vector.broadcast %cst_8 : f32 to vector<4x128xf32>
    %11 = arith.cmpf ogt, %9, %10 : vector<4x128xf32>
    %cst_9 = arith.constant 0.00999999977 : f32
    %12 = vector.broadcast %cst_9 : f32 to vector<4x128xf32>
    %13 = arith.mulf %12, %9 : vector<4x128xf32>
    %14 = arith.select %11, %9, %13 : vector<4x128xi1>, vector<4x128xf32>
    %c0_10 = arith.constant 0 : index
    %c0_11 = arith.constant 0 : index
    %15 = vector.load %arg4[%c0_10, %c0_11] : memref<4x4xf32, #tpu.memory_space<vmem>>, vector<4x4xf32>
    %cst_12 = arith.constant dense<0.000000e+00> : vector<4x128xf32>
    %16 = tpu.matmul %15, %14, %cst_12 {dimension_numbers = #tpu.dot_dimension_numbers<[1], [0], [0], [1], [0, 0, 1, 1], [], []>} : vector<4x4xf32>, vector<4x128xf32>, vector<4x128xf32> -> vector<4x128xf32>
    %c0_13 = arith.constant 0 : index
    %c0_14 = arith.constant 0 : index
    %17 = vector.load %arg7[%c0_13, %c0_14] : memref<4x1xf32, #tpu.memory_space<vmem>>, vector<4x1xf32>
    %18 = vector.broadcast %17 : vector<4x1xf32> to vector<4x128xf32>
    %19 = arith.mulf %16, %18 : vector<4x128xf32>
    %c0_15 = arith.constant 0 : index
    %c0_16 = arith.constant 0 : index
    %20 = vector.load %arg8[%c0_15, %c0_16] : memref<4x1xf32, #tpu.memory_space<vmem>>, vector<4x1xf32>
    %21 = vector.broadcast %20 : vector<4x1xf32> to vector<4x128xf32>
    %22 = arith.addf %19, %21 : vector<4x128xf32>
    %23 = arith.addf %22, %1 : vector<4x128xf32>
    %cst_17 = arith.constant 0.000000e+00 : f32
    %24 = vector.broadcast %cst_17 : f32 to vector<4x128xf32>
    %25 = arith.cmpf ogt, %23, %24 : vector<4x128xf32>
    %cst_18 = arith.constant 0.00999999977 : f32
    %26 = vector.broadcast %cst_18 : f32 to vector<4x128xf32>
    %27 = arith.mulf %26, %23 : vector<4x128xf32>
    %28 = arith.select %25, %23, %27 : vector<4x128xi1>, vector<4x128xf32>
    %c0_19 = arith.constant 0 : index
    %c0_20 = arith.constant 0 : index
    %c0_21 = arith.constant 0 : index
    %29 = vector.load %arg9[%c0_19, %c0_20, %c0_21] : memref<1x4x128xf32, #tpu.memory_space<vmem>>, vector<1x4x128xf32>
    %30 = vector.shape_cast %29 : vector<1x4x128xf32> to vector<4x128xf32>
    %31 = vector.shape_cast %28 : vector<4x128xf32> to vector<1x4x128xf32>
    tpu.vector_store %arg9[%c0_19, %c0_20, %c0_21], %31 {strides = array<i32>} : memref<1x4x128xf32, #tpu.memory_space<vmem>>, vector<1x4x128xf32>,
    return
  }
  func.func @transform_0(%arg0: i32, %arg1: i32) -> (i32, i32, i32) {
    %c0_i32 = arith.constant 0 : i32
    %c0_i32_0 = arith.constant 0 : i32
    return %arg0, %c0_i32, %arg1 : i32, i32, i32
  }
  func.func @transform_1(%arg0: i32, %arg1: i32) -> (i32, i32) {
    %c0_i32 = arith.constant 0 : i32
    %c0_i32_0 = arith.constant 0 : i32
    %c0_i32_1 = arith.constant 0 : i32
    return %c0_i32, %c0_i32_0 : i32, i32
  }
  func.func @transform_2(%arg0: i32, %arg1: i32) -> (i32, i32) {
    %c0_i32 = arith.constant 0 : i32
    %c0_i32_0 = arith.constant 0 : i32
    %c0_i32_1 = arith.constant 0 : i32
    return %c0_i32, %c0_i32_0 : i32, i32
  }
  func.func @transform_3(%arg0: i32, %arg1: i32) -> (i32, i32) {
    %c0_i32 = arith.constant 0 : i32
    %c0_i32_0 = arith.constant 0 : i32
    %c0_i32_1 = arith.constant 0 : i32
    return %c0_i32, %c0_i32_0 : i32, i32
  }
  func.func @transform_4(%arg0: i32, %arg1: i32) -> (i32, i32) {
    %c0_i32 = arith.constant 0 : i32
    %c0_i32_0 = arith.constant 0 : i32
    %c0_i32_1 = arith.constant 0 : i32
    return %c0_i32, %c0_i32_0 : i32, i32
  }
  func.func @transform_5(%arg0: i32, %arg1: i32) -> (i32, i32) {
    %c0_i32 = arith.constant 0 : i32
    %c0_i32_0 = arith.constant 0 : i32
    %c0_i32_1 = arith.constant 0 : i32
    return %c0_i32, %c0_i32_0 : i32, i32
  }
  func.func @transform_6(%arg0: i32, %arg1: i32) -> (i32, i32) {
    %c0_i32 = arith.constant 0 : i32
    %c0_i32_0 = arith.constant 0 : i32
    %c0_i32_1 = arith.constant 0 : i32
    return %c0_i32, %c0_i32_0 : i32, i32
  }
  func.func @transform_7(%arg0: i32, %arg1: i32) -> (i32, i32, i32) {
    %c0_i32 = arith.constant 0 : i32
    %c0_i32_0 = arith.constant 0 : i32
    return %arg0, %c0_i32, %arg1 : i32, i32, i32
  }
}

</mosaic_0001>

<llo_original>
// kernel: basic_block1d.3
$region0: #{basic_block1d.3}
  #allocation0 [shape = 'u32[]', space=smem, size = 0x4, offset = 0x4, fixed_abs, tag = 'smem constant byte address 0x4 - core index']
  #allocation1 [shape = 'u32[144,128]{1,0:T(1,128)}', space=vmem, size = 0x12000, scoped, tag = 'internal scratch']
  %s0 = inlined_call_operand.vmem [shape: f32[2,4,128], index: 0, kind: input, shape index: {}]
  %s1 = inlined_call_operand.vmem [shape: f32[4,4], index: 1, kind: input, shape index: {}]
  %s2 = inlined_call_operand.vmem [shape: f32[2,4,1], index: 2, kind: output, shape index: {0}]
  %s3 = inlined_call_operand.vmem [shape: f32[2,4,1], index: 3, kind: output, shape index: {1}]
  %4 = xla_tuple %s2, %s3
  %s5 = sld [smem:[#allocation0]]
  $region53: #{basic_block1d.3} parent=0
    _
  %s7 = ssub.s32 1, %s5
  %s8 = scalar_select 0, %s7, %s5
  loop: start=0, step=1, limit=4
  $region2: #{basic_block1d.3} parent=0 // loop_pre_header
    _
  $region3: #{basic_block1d.3} parent=0 // loop_header
    %s10 = sphi 0, %s14
    %p11 = scmp.ge.s32.totalorder %s10, 4
    %s17 = sphi 0, %s29
    %s18 = sphi 0, %s25
    %s19 = sphi 0, %s17
    %s20 = sphi 0, %s18
    %s21 = sphi 0, %s19
    %s22 = sphi 0, %s20
    %s34 = sphi 0, %s36
    %s37 = sphi 0, %s34
    %s38 = sphi 0, %s37
    %s54 = sphi 0, %s38
    %s58 = sphi 0, %s58
    %s60 = sphi 0, %s58
    %s61 = sphi 0, %s60
    %s75 = sphi 0, %s61
    %s81 = sphi 0, %s83
    %s84 = sphi 0, %s81
    %s85 = sphi 0, %s84
    %s101 = sphi 0, %s85
    %s107 = sphi 0, %s109
    %s110 = sphi 0, %s107
    %s111 = sphi 0, %s110
    %s127 = sphi 0, %s111
  $region4: #{basic_block1d.3} parent=0 // loop_header_branch
    %13 = sbr.rel (%p11) target = $region8
  $region5: #{basic_block1d.3} parent=0 // loop_body
    %s15 = ssub.s32 %s10, 1
    %s16 = ssub.s32 %s10, 2
    %s23 = sadd.s32 1, %s18
    %p24 = scmp.ge.s32.totalorder %s23, 1
    %s25 = scalar_select %p24, 0, %s23
    %s26 = sadd.s32 1, %s17
    %s27 = scalar_select %p24, %s26, %s17
    %p28 = scmp.ge.s32.totalorder %s27, 2
    %s29 = scalar_select %p28, 0, %s27
    %s30 = ssub.s32 %s17, %s29
    %s31 = ssub.s32 %s18, %s25
    %s32 = sor.u32 %s30, %s31
    %p33 = scmp.eq.s32.totalorder %s32, 0
    %s35 = sadd.s32 %s34, 1
    %s36 = scalar_select %p33, %s34, %s35
    %p39 = pneg %p33
    %p40 = scmp.eq.s32.totalorder %s10, 1
    %p41 = por %p39, %p40
    %p42 = scmp.ne.s32.totalorder %s34, %s37
    %p43 = scmp.eq.s32.totalorder %s10, 0
    %p44 = por %p42, %p43
    %p45 = scmp.ne.s32.totalorder %s34, %s37
    %p46 = scmp.eq.s32.totalorder %s15, 1
    %p47 = por %p45, %p46
    %p48 = scmp.ne.s32.totalorder %s37, %s38
    %p49 = scmp.eq.s32.totalorder %s15, 0
    %p50 = por %p48, %p49
    %p51 = scmp.ne.s32.totalorder %s37, %s38
    %p52 = scmp.eq.s32.totalorder %s16, 1
    %p53 = por %p51, %p52
    %p55 = scmp.ne.s32.totalorder %s38, %s54
    %p56 = scmp.eq.s32.totalorder %s16, 0
    %p57 = por %p55, %p56
    %s59 = sadd.s32 %s58, 1
    %p62 = scmp.eq.s32.totalorder %s10, 1
    %p63 = scmp.ne.s32.totalorder %s58, %s60
    %p64 = scmp.eq.s32.totalorder %s10, 0
    %p65 = por %p63, %p64
    %p66 = scmp.ne.s32.totalorder %s58, %s60
    %p67 = scmp.eq.s32.totalorder %s15, 1
    %p68 = por %p66, %p67
    %p69 = scmp.ne.s32.totalorder %s60, %s61
    %p70 = scmp.eq.s32.totalorder %s15, 0
    %p71 = por %p69, %p70
    %p72 = scmp.ne.s32.totalorder %s60, %s61
    %p73 = scmp.eq.s32.totalorder %s16, 1
    %p74 = por %p72, %p73
    %p76 = scmp.ne.s32.totalorder %s61, %s75
    %p77 = scmp.eq.s32.totalorder %s16, 0
    %p78 = por %p76, %p77
    %s79 = ssub.s32 %s17, %s29
    %p80 = scmp.eq.s32.totalorder %s79, 0
    %s82 = sadd.s32 %s81, 1
    %s83 = scalar_select %p80, %s81, %s82
    %p86 = pneg %p80
    %p87 = scmp.eq.s32.totalorder %s10, 1
    %p88 = por %p86, %p87
    %p89 = scmp.ne.s32.totalorder %s81, %s84
    %p90 = scmp.eq.s32.totalorder %s10, 0
    %p91 = por %p89, %p90
    %p92 = scmp.ne.s32.totalorder %s81, %s84
    %p93 = scmp.eq.s32.totalorder %s15, 1
    %p94 = por %p92, %p93
    %p95 = scmp.ne.s32.totalorder %s84, %s85
    %p96 = scmp.eq.s32.totalorder %s15, 0
    %p97 = por %p95, %p96
    %p98 = scmp.ne.s32.totalorder %s84, %s85
    %p99 = scmp.eq.s32.totalorder %s16, 1
    %p100 = por %p98, %p99
    %p102 = scmp.ne.s32.totalorder %s85, %s101
    %p103 = scmp.eq.s32.totalorder %s16, 0
    %p104 = por %p102, %p103
    %s105 = ssub.s32 %s17, %s29
    %p106 = scmp.eq.s32.totalorder %s105, 0
    %s108 = sadd.s32 %s107, 1
    %s109 = scalar_select %p106, %s107, %s108
    %p112 = pneg %p106
    %p113 = scmp.eq.s32.totalorder %s10, 1
    %p114 = por %p112, %p113
    %p115 = scmp.ne.s32.totalorder %s107, %s110
    %p116 = scmp.eq.s32.totalorder %s10, 0
    %p117 = por %p115, %p116
    %p118 = scmp.ne.s32.totalorder %s107, %s110
    %p119 = scmp.eq.s32.totalorder %s15, 1
    %p120 = por %p118, %p119
    %p121 = scmp.ne.s32.totalorder %s110, %s111
    %p122 = scmp.eq.s32.totalorder %s15, 0
    %p123 = por %p121, %p122
    %p124 = scmp.ne.s32.totalorder %s110, %s111
    %p125 = scmp.eq.s32.totalorder %s16, 1
    %p126 = por %p124, %p125
    %p128 = scmp.ne.s32.totalorder %s111, %s127
    %p129 = scmp.eq.s32.totalorder %s16, 0
    %p130 = por %p128, %p129
    %p131 = scmp.le.s32.totalorder 1, %s10
    %p132 = scmp.lt.s32.totalorder %s10, 3
    %p133 = pnand %p131, %p132
    %p134 = pneg %p133
    // Predicated region
    $region9: #{basic_block1d.3} parent=5 // pred_check
      _
    $region10: #{basic_block1d.3} parent=5 // pred_check_branch
      %136 = sbr.rel (%p133) target = $region12
    $region11: #{basic_block1d.3} parent=5 // pred_region
      %s137 = ssub.s32 %s10, 1
      // Predicated region
      $region13: #{basic_block1d.3} parent=11 // pred_check
        %p138 = pneg %p71
      $region14: #{basic_block1d.3} parent=11 // pred_check_branch
        %140 = sbr.rel (%p138) target = $region16
      $region15: #{basic_block1d.3} parent=11 // pred_region
        _
      $region16: #{basic_block1d.3} parent=11 // pred_fallthru
        _
    $region12: #{basic_block1d.3} parent=5 // pred_fallthru
      _
    %p141 = scmp.lt.s32.totalorder %s10, 2
    // Predicated region
    $region17: #{basic_block1d.3} parent=5 // pred_check
      %p142 = pneg %p141
    $region18: #{basic_block1d.3} parent=5 // pred_check_branch
      %144 = sbr.rel (%p142) target = $region20
    $region19: #{basic_block1d.3} parent=5 // pred_region
      // Predicated region
      $region21: #{basic_block1d.3} parent=19 // pred_check
        %p145 = pneg %p44
      $region22: #{basic_block1d.3} parent=19 // pred_check_branch
        %147 = sbr.rel (%p145) target = $region24
      $region23: #{basic_block1d.3} parent=19 // pred_region
        %p148 = scmp.lt.s32.totalorder %s17, 1
        %s149 = scalar_select %p148, %s17, 1
        %p150 = scmp.lt.s32.totalorder %s18, 0
        %s151 = scalar_select %p150, %s18, 0
        %s152 = sadd.s32 %s151, %s149
        %s153 = smul.addr %s152, 4
        %s154 = scalar_lea.vmem %s0, %s153
      $region24: #{basic_block1d.3} parent=19 // pred_fallthru
        _
    $region20: #{basic_block1d.3} parent=5 // pred_fallthru
      _
    %p155 = scmp.le.s32.totalorder 1, %s10
    %p156 = scmp.lt.s32.totalorder %s10, 3
    %p157 = pnand %p155, %p156
    %p158 = pneg %p157
    // Predicated region
    $region25: #{basic_block1d.3} parent=5 // pred_check
      _
    $region26: #{basic_block1d.3} parent=5 // pred_check_branch
      %160 = sbr.rel (%p157) target = $region28
    $region27: #{basic_block1d.3} parent=5 // pred_region
      %s161 = ssub.s32 %s10, 1
      %p162 = scmp.lt.s32.totalorder %s19, 1
      %s163 = scalar_select %p162, %s19, 1
      %p164 = scmp.lt.s32.totalorder %s20, 0
      %s165 = scalar_select %p164, %s20, 0
      %s166 = sadd.s32 %s165, %s163
      %s167 = smul.addr %s166, 4
      %s168 = scalar_lea.vmem %s0, %s167
      %p169 = pneg %p50
      %p170 = pneg %p47
      %p171 = pneg %p71
      %p172 = pneg %p68
      %p173 = pneg %p97
      %p174 = pneg %p94
      %p175 = scmp.lt.s32.totalorder %s19, 1
      %s176 = scalar_select %p175, %s19, 1
      %s177 = smul.addr %s176, 4
      %s178 = scalar_lea.vmem %s2, %s177
      %p179 = pneg %p123
      %p180 = pneg %p120
      %p181 = scmp.lt.s32.totalorder %s19, 1
      %s182 = scalar_select %p181, %s19, 1
      %s183 = smul.addr %s182, 4
      %s184 = scalar_lea.vmem %s3, %s183
      %p185 = scmp.lt.s32.totalorder %s19, 1
      %s186 = scalar_select %p185, %s19, 1
      %p187 = scmp.lt.s32.totalorder %s20, 0
      %s188 = scalar_select %p187, %s20, 0
      %s189 = sadd.s32 %s188, %s186
      %s190 = smul.addr %s189, 4
      %s191 = scalar_lea.vmem %s0, %s190
      %p192 = scmp.lt.s32.totalorder %s19, 1
      %s193 = scalar_select %p192, %s19, 1
      %s194 = smul.addr %s193, 4
      %s195 = scalar_lea.vmem %s2, %s194
      %p196 = scmp.lt.s32.totalorder %s19, 1
      %s197 = scalar_select %p196, %s19, 1
      %s198 = smul.addr %s197, 4
      %s199 = scalar_lea.vmem %s3, %s198
      %p200 = scmp.eq.s32.totalorder %s20, 0
      // Predicated region
      $region29: #{basic_block1d.3} parent=27 // pred_check
        %p201 = pneg %p200
      $region30: #{basic_block1d.3} parent=27 // pred_check_branch
        %203 = sbr.rel (%p201) target = $region32
      $region31: #{basic_block1d.3} parent=27 // pred_region
        %vm204 = vcmask 3072
        %205 = vst.msk [vmem:[%s195] sm:$0xf] %vm204, 0.0
        %206 = vst.msk [vmem:[%s199] sm:$0xf] %vm204, 0.0
      $region32: #{basic_block1d.3} parent=27 // pred_fallthru
        _
      %v207 = vld [vmem:[%s1] sm:$0xf]
      %v208 = vld [vmem:[%s191] sm:$0xf]
      %vm209 = vcmask 31744
      %v211 = vsel %vm209, %v207, 0
      %vm213 = vcmask 1043456
      %v215 = vsel %vm213, %v208, 0
      %217 = vmatprep.subr.mxu0 0.0
      %218 = vmatpush1.msra.mxu0 0.0
      %219 = vmatprep.subr.mxu0 0.0
      %220 = vmatpush1.msra.mxu0 0.0
      %221 = vmatprep.subr.mxu0 0.0
      %222 = vmatpush1.msra.mxu0 0.0
      %223 = vmatprep.subr.mxu0 0.0
      %224 = vmatpush1.msra.mxu0 0.0
      %225 = vmatprep.subr.mxu0 0.0
      %226 = vmatpush1.msra.mxu0 0.0
      %227 = vmatprep.subr.mxu0 0.0
      %228 = vmatpush1.msra.mxu0 0.0
      %229 = vmatprep.subr.mxu0 0.0
      %230 = vmatpush1.msra.mxu0 0.0
      %231 = vmatprep.subr.mxu0 0.0
      %232 = vmatpush1.msra.mxu0 0.0
      %233 = vmatprep.subr.mxu0 0.0
      %234 = vmatpush1.msra.mxu0 0.0
      %235 = vmatprep.subr.mxu0 0.0
      %236 = vmatpush1.msra.mxu0 0.0
      %237 = vmatprep.subr.mxu0 0.0
      %238 = vmatpush1.msra.mxu0 0.0
      %239 = vmatprep.subr.mxu0 0.0
      %240 = vmatpush1.msra.mxu0 0.0
      %241 = vmatprep.subr.mxu0 0.0
      %242 = vmatpush1.msra.mxu0 0.0
      %243 = vmatprep.subr.mxu0 0.0
      %244 = vmatpush1.msra.mxu0 0.0
      %245 = vmatprep.subr.mxu0 0.0
      %246 = vmatpush1.msra.mxu0 0.0
      %247 = vmatprep.subr.mxu0 0.0
      %248 = vmatpush1.msra.mxu0 %v215
      %249 = vmatprep.subr.mxu0 0.0
      %250 = vmatpush2.msra.mxu0 0.0
      %251 = vmatprep.subr.mxu0 0.0
      %252 = vmatpush2.msra.mxu0 0.0
      %253 = vmatprep.subr.mxu0 0.0
      %254 = vmatpush2.msra.mxu0 0.0
      %255 = vmatprep.subr.mxu0 0.0
      %256 = vmatpush2.msra.mxu0 0.0
      %257 = vmatprep.subr.mxu0 0.0
      %258 = vmatpush2.msra.mxu0 0.0
      %259 = vmatprep.subr.mxu0 0.0
      %260 = vmatpush2.msra.mxu0 0.0
      %261 = vmatprep.subr.mxu0 0.0
      %262 = vmatpush2.msra.mxu0 0.0
      %263 = vmatprep.subr.mxu0 0.0
      %264 = vmatpush2.msra.mxu0 0.0
      %265 = vmatprep.subr.mxu0 0.0
      %266 = vmatpush2.msra.mxu0 0.0
      %267 = vmatprep.subr.mxu0 0.0
      %268 = vmatpush2.msra.mxu0 0.0
      %269 = vmatprep.subr.mxu0 0.0
      %270 = vmatpush2.msra.mxu0 0.0
      %271 = vmatprep.subr.mxu0 0.0
      %272 = vmatpush2.msra.mxu0 0.0
      %273 = vmatprep.subr.mxu0 0.0
      %274 = vmatpush2.msra.mxu0 0.0
      %275 = vmatprep.subr.mxu0 0.0
      %276 = vmatpush2.msra.mxu0 0.0
      %277 = vmatprep.subr.mxu0 0.0
      %278 = vmatpush2.msra.mxu0 0.0
      %279 = vmatprep.subr.mxu0 0.0
      %280 = vmatpush2.msra.mxu0 0.0
      %281 = vmatprep.mubr.f32.mxu0 0.0
      %282 = vmatmul.mubr.f32.gmra.mxu0 %v211
      %v283 = vpop.f32.mrf.mxu0
      %v284 = vadd.f32 0.0, %v283
      %v285 = vpop.f32.mrf.mxu0
      %286 = vdwg.mxu0
      %s287 = smul.u32 %s20, 128
      %v288 = vlaneseq
      %v289 = vand.u32 %v288, 127
      %v290 = vstv %s287
      %v291 = vadd.s32 %v290, %v289
      %vm292 = vcmp.lt.s32.totalorder %v291, 16
      %v293 = vsel %vm292, %v284, 0.0
      %v294 = vld [vmem:[%s195] sm:$0xf]
      %v295 = vsel %vm213, %v293, 0.0
      %296 = vadd.xlane.f32.xlu0 %v295
      %v297 = vpop.xlane.xlu0 %296
      %v298 = vadd.f32 %v294, %v297
      %vm299 = vcmask 3072
      %300 = vst.msk [vmem:[%s195] sm:$0xf] %vm299, %v298
      %v301 = vld [vmem:[%s199] sm:$0xf]
      %v302 = vmul.f32 %v293, %v293
      %v303 = vsel %vm213, %v302, 0.0
      %304 = vadd.xlane.f32.xlu0 %v303
      %v305 = vpop.xlane.xlu0 %304
      %v306 = vadd.f32 %v301, %v305
      %307 = vst.msk [vmem:[%s199] sm:$0xf] %vm299, %v306
      %p308 = scmp.lt.s32.totalorder %s19, 1
      %s309 = scalar_select %p308, %s19, 1
      %s310 = smul.addr %s309, 4
      %s311 = scalar_lea.vmem %s2, %s310
      %p312 = scmp.lt.s32.totalorder %s19, 1
      %s313 = scalar_select %p312, %s19, 1
      %s314 = smul.addr %s313, 4
      %s315 = scalar_lea.vmem %s3, %s314
      // Predicated region
      $region33: #{basic_block1d.3} parent=27 // pred_check
        %p316 = pneg %p94
      $region34: #{basic_block1d.3} parent=27 // pred_check_branch
        %318 = sbr.rel (%p316) target = $region36
      $region35: #{basic_block1d.3} parent=27 // pred_region
        _
      $region36: #{basic_block1d.3} parent=27 // pred_fallthru
        _
      // Predicated region
      $region37: #{basic_block1d.3} parent=27 // pred_check
        %p319 = pneg %p120
      $region38: #{basic_block1d.3} parent=27 // pred_check_branch
        %321 = sbr.rel (%p319) target = $region40
      $region39: #{basic_block1d.3} parent=27 // pred_region
        _
      $region40: #{basic_block1d.3} parent=27 // pred_fallthru
        _
    $region28: #{basic_block1d.3} parent=5 // pred_fallthru
      _
    %p322 = scmp.le.s32.totalorder 2, %s10
    // Predicated region
    $region41: #{basic_block1d.3} parent=5 // pred_check
      %p323 = pneg %p322
    $region42: #{basic_block1d.3} parent=5 // pred_check_branch
      %325 = sbr.rel (%p323) target = $region44
    $region43: #{basic_block1d.3} parent=5 // pred_region
      %s326 = ssub.s32 %s10, 2
      // Predicated region
      $region45: #{basic_block1d.3} parent=43 // pred_check
        %p327 = pneg %p100
      $region46: #{basic_block1d.3} parent=43 // pred_check_branch
        %329 = sbr.rel (%p327) target = $region48
      $region47: #{basic_block1d.3} parent=43 // pred_region
        %p330 = scmp.lt.s32.totalorder %s21, 1
        %s331 = scalar_select %p330, %s21, 1
        %s332 = smul.addr %s331, 4
        %s333 = scalar_lea.vmem %s2, %s332
      $region48: #{basic_block1d.3} parent=43 // pred_fallthru
        _
      // Predicated region
      $region49: #{basic_block1d.3} parent=43 // pred_check
        %p334 = pneg %p126
      $region50: #{basic_block1d.3} parent=43 // pred_check_branch
        %336 = sbr.rel (%p334) target = $region52
      $region51: #{basic_block1d.3} parent=43 // pred_region
        %p337 = scmp.lt.s32.totalorder %s21, 1
        %s338 = scalar_select %p337, %s21, 1
        %s339 = smul.addr %s338, 4
        %s340 = scalar_lea.vmem %s3, %s339
      $region52: #{basic_block1d.3} parent=43 // pred_fallthru
        _
    $region44: #{basic_block1d.3} parent=5 // pred_fallthru
      _
  $region6: #{basic_block1d.3} parent=0 // loop_footer
    %s14 = sadd.s32 1, %s10
  $region7: #{basic_block1d.3} parent=0 // loop_footer_branch
    %9 = sbr.rel target = $region3
  $region8: #{basic_block1d.3} parent=0 // loop_exit
    _

// kernel: basic_block1d.4
$region0: #{basic_block1d.4}
  #allocation0 [shape = 'u32[]', space=smem, size = 0x4, offset = 0x4, fixed_abs, tag = 'smem constant byte address 0x4 - core index']
  #allocation1 [shape = 'u32[144,128]{1,0:T(1,128)}', space=vmem, size = 0x12000, scoped, tag = 'internal scratch']
  %s0 = inlined_call_operand.vmem [shape: f32[2,4,128], index: 0, kind: input, shape index: {}]
  %s1 = inlined_call_operand.vmem [shape: f32[4,4], index: 1, kind: input, shape index: {}]
  %s2 = inlined_call_operand.vmem [shape: f32[4,4], index: 2, kind: input, shape index: {}]
  %s3 = inlined_call_operand.vmem [shape: f32[4,1], index: 3, kind: input, shape index: {}]
  %s4 = inlined_call_operand.vmem [shape: f32[4,1], index: 4, kind: input, shape index: {}]
  %s5 = inlined_call_operand.vmem [shape: f32[2,4,1], index: 5, kind: output, shape index: {0}]
  %s6 = inlined_call_operand.vmem [shape: f32[2,4,1], index: 6, kind: output, shape index: {1}]
  %7 = xla_tuple %s5, %s6
  %s8 = sld [smem:[#allocation0]]
  $region65: #{basic_block1d.4} parent=0
    _
  %s10 = ssub.s32 1, %s8
  %s11 = scalar_select 0, %s10, %s8
  loop: start=0, step=1, limit=4
  $region2: #{basic_block1d.4} parent=0 // loop_pre_header
    _
  $region3: #{basic_block1d.4} parent=0 // loop_header
    %s13 = sphi 0, %s17
    %p14 = scmp.ge.s32.totalorder %s13, 4
    %s20 = sphi 0, %s32
    %s21 = sphi 0, %s28
    %s22 = sphi 0, %s20
    %s23 = sphi 0, %s21
    %s24 = sphi 0, %s22
    %s25 = sphi 0, %s23
    %s37 = sphi 0, %s39
    %s40 = sphi 0, %s37
    %s41 = sphi 0, %s40
    %s57 = sphi 0, %s41
    %s61 = sphi 0, %s61
    %s63 = sphi 0, %s61
    %s64 = sphi 0, %s63
    %s78 = sphi 0, %s64
    %s82 = sphi 0, %s82
    %s84 = sphi 0, %s82
    %s85 = sphi 0, %s84
    %s99 = sphi 0, %s85
    %s103 = sphi 0, %s103
    %s105 = sphi 0, %s103
    %s106 = sphi 0, %s105
    %s120 = sphi 0, %s106
    %s124 = sphi 0, %s124
    %s126 = sphi 0, %s124
    %s127 = sphi 0, %s126
    %s141 = sphi 0, %s127
    %s147 = sphi 0, %s149
    %s150 = sphi 0, %s147
    %s151 = sphi 0, %s150
    %s167 = sphi 0, %s151
    %s173 = sphi 0, %s175
    %s176 = sphi 0, %s173
    %s177 = sphi 0, %s176
    %s193 = sphi 0, %s177
  $region4: #{basic_block1d.4} parent=0 // loop_header_branch
    %16 = sbr.rel (%p14) target = $region8
  $region5: #{basic_block1d.4} parent=0 // loop_body
    %s18 = ssub.s32 %s13, 1
    %s19 = ssub.s32 %s13, 2
    %s26 = sadd.s32 1, %s21
    %p27 = scmp.ge.s32.totalorder %s26, 1
    %s28 = scalar_select %p27, 0, %s26
    %s29 = sadd.s32 1, %s20
    %s30 = scalar_select %p27, %s29, %s20
    %p31 = scmp.ge.s32.totalorder %s30, 2
    %s32 = scalar_select %p31, 0, %s30
    %s33 = ssub.s32 %s20, %s32
    %s34 = ssub.s32 %s21, %s28
    %s35 = sor.u32 %s33, %s34
    %p36 = scmp.eq.s32.totalorder %s35, 0
    %s38 = sadd.s32 %s37, 1
    %s39 = scalar_select %p36, %s37, %s38
    %p42 = pneg %p36
    %p43 = scmp.eq.s32.totalorder %s13, 1
    %p44 = por %p42, %p43
    %p45 = scmp.ne.s32.totalorder %s37, %s40
    %p46 = scmp.eq.s32.totalorder %s13, 0
    %p47 = por %p45, %p46
    %p48 = scmp.ne.s32.totalorder %s37, %s40
    %p49 = scmp.eq.s32.totalorder %s18, 1
    %p50 = por %p48, %p49
    %p51 = scmp.ne.s32.totalorder %s40, %s41
    %p52 = scmp.eq.s32.totalorder %s18, 0
    %p53 = por %p51, %p52
    %p54 = scmp.ne.s32.totalorder %s40, %s41
    %p55 = scmp.eq.s32.totalorder %s19, 1
    %p56 = por %p54, %p55
    %p58 = scmp.ne.s32.totalorder %s41, %s57
    %p59 = scmp.eq.s32.totalorder %s19, 0
    %p60 = por %p58, %p59
    %s62 = sadd.s32 %s61, 1
    %p65 = scmp.eq.s32.totalorder %s13, 1
    %p66 = scmp.ne.s32.totalorder %s61, %s63
    %p67 = scmp.eq.s32.totalorder %s13, 0
    %p68 = por %p66, %p67
    %p69 = scmp.ne.s32.totalorder %s61, %s63
    %p70 = scmp.eq.s32.totalorder %s18, 1
    %p71 = por %p69, %p70
    %p72 = scmp.ne.s32.totalorder %s63, %s64
    %p73 = scmp.eq.s32.totalorder %s18, 0
    %p74 = por %p72, %p73
    %p75 = scmp.ne.s32.totalorder %s63, %s64
    %p76 = scmp.eq.s32.totalorder %s19, 1
    %p77 = por %p75, %p76
    %p79 = scmp.ne.s32.totalorder %s64, %s78
    %p80 = scmp.eq.s32.totalorder %s19, 0
    %p81 = por %p79, %p80
    %s83 = sadd.s32 %s82, 1
    %p86 = scmp.eq.s32.totalorder %s13, 1
    %p87 = scmp.ne.s32.totalorder %s82, %s84
    %p88 = scmp.eq.s32.totalorder %s13, 0
    %p89 = por %p87, %p88
    %p90 = scmp.ne.s32.totalorder %s82, %s84
    %p91 = scmp.eq.s32.totalorder %s18, 1
    %p92 = por %p90, %p91
    %p93 = scmp.ne.s32.totalorder %s84, %s85
    %p94 = scmp.eq.s32.totalorder %s18, 0
    %p95 = por %p93, %p94
    %p96 = scmp.ne.s32.totalorder %s84, %s85
    %p97 = scmp.eq.s32.totalorder %s19, 1
    %p98 = por %p96, %p97
    %p100 = scmp.ne.s32.totalorder %s85, %s99
    %p101 = scmp.eq.s32.totalorder %s19, 0
    %p102 = por %p100, %p101
    %s104 = sadd.s32 %s103, 1
    %p107 = scmp.eq.s32.totalorder %s13, 1
    %p108 = scmp.ne.s32.totalorder %s103, %s105
    %p109 = scmp.eq.s32.totalorder %s13, 0
    %p110 = por %p108, %p109
    %p111 = scmp.ne.s32.totalorder %s103, %s105
    %p112 = scmp.eq.s32.totalorder %s18, 1
    %p113 = por %p111, %p112
    %p114 = scmp.ne.s32.totalorder %s105, %s106
    %p115 = scmp.eq.s32.totalorder %s18, 0
    %p116 = por %p114, %p115
    %p117 = scmp.ne.s32.totalorder %s105, %s106
    %p118 = scmp.eq.s32.totalorder %s19, 1
    %p119 = por %p117, %p118
    %p121 = scmp.ne.s32.totalorder %s106, %s120
    %p122 = scmp.eq.s32.totalorder %s19, 0
    %p123 = por %p121, %p122
    %s125 = sadd.s32 %s124, 1
    %p128 = scmp.eq.s32.totalorder %s13, 1
    %p129 = scmp.ne.s32.totalorder %s124, %s126
    %p130 = scmp.eq.s32.totalorder %s13, 0
    %p131 = por %p129, %p130
    %p132 = scmp.ne.s32.totalorder %s124, %s126
    %p133 = scmp.eq.s32.totalorder %s18, 1
    %p134 = por %p132, %p133
    %p135 = scmp.ne.s32.totalorder %s126, %s127
    %p136 = scmp.eq.s32.totalorder %s18, 0
    %p137 = por %p135, %p136
    %p138 = scmp.ne.s32.totalorder %s126, %s127
    %p139 = scmp.eq.s32.totalorder %s19, 1
    %p140 = por %p138, %p139
    %p142 = scmp.ne.s32.totalorder %s127, %s141
    %p143 = scmp.eq.s32.totalorder %s19, 0
    %p144 = por %p142, %p143
    %s145 = ssub.s32 %s20, %s32
    %p146 = scmp.eq.s32.totalorder %s145, 0
    %s148 = sadd.s32 %s147, 1
    %s149 = scalar_select %p146, %s147, %s148
    %p152 = pneg %p146
    %p153 = scmp.eq.s32.totalorder %s13, 1
    %p154 = por %p152, %p153
    %p155 = scmp.ne.s32.totalorder %s147, %s150
    %p156 = scmp.eq.s32.totalorder %s13, 0
    %p157 = por %p155, %p156
    %p158 = scmp.ne.s32.totalorder %s147, %s150
    %p159 = scmp.eq.s32.totalorder %s18, 1
    %p160 = por %p158, %p159
    %p161 = scmp.ne.s32.totalorder %s150, %s151
    %p162 = scmp.eq.s32.totalorder %s18, 0
    %p163 = por %p161, %p162
    %p164 = scmp.ne.s32.totalorder %s150, %s151
    %p165 = scmp.eq.s32.totalorder %s19, 1
    %p166 = por %p164, %p165
    %p168 = scmp.ne.s32.totalorder %s151, %s167
    %p169 = scmp.eq.s32.totalorder %s19, 0
    %p170 = por %p168, %p169
    %s171 = ssub.s32 %s20, %s32
    %p172 = scmp.eq.s32.totalorder %s171, 0
    %s174 = sadd.s32 %s173, 1
    %s175 = scalar_select %p172, %s173, %s174
    %p178 = pneg %p172
    %p179 = scmp.eq.s32.totalorder %s13, 1
    %p180 = por %p178, %p179
    %p181 = scmp.ne.s32.totalorder %s173, %s176
    %p182 = scmp.eq.s32.totalorder %s13, 0
    %p183 = por %p181, %p182
    %p184 = scmp.ne.s32.totalorder %s173, %s176
    %p185 = scmp.eq.s32.totalorder %s18, 1
    %p186 = por %p184, %p185
    %p187 = scmp.ne.s32.totalorder %s176, %s177
    %p188 = scmp.eq.s32.totalorder %s18, 0
    %p189 = por %p187, %p188
    %p190 = scmp.ne.s32.totalorder %s176, %s177
    %p191 = scmp.eq.s32.totalorder %s19, 1
    %p192 = por %p190, %p191
    %p194 = scmp.ne.s32.totalorder %s177, %s193
    %p195 = scmp.eq.s32.totalorder %s19, 0
    %p196 = por %p194, %p195
    %p197 = scmp.le.s32.totalorder 1, %s13
    %p198 = scmp.lt.s32.totalorder %s13, 3
    %p199 = pnand %p197, %p198
    %p200 = pneg %p199
    // Predicated region
    $region9: #{basic_block1d.4} parent=5 // pred_check
      _
    $region10: #{basic_block1d.4} parent=5 // pred_check_branch
      %202 = sbr.rel (%p199) target = $region12
    $region11: #{basic_block1d.4} parent=5 // pred_region
      %s203 = ssub.s32 %s13, 1
      // Predicated region
      $region13: #{basic_block1d.4} parent=11 // pred_check
        %p204 = pneg %p74
      $region14: #{basic_block1d.4} parent=11 // pred_check_branch
        %206 = sbr.rel (%p204) target = $region16
      $region15: #{basic_block1d.4} parent=11 // pred_region
        _
      $region16: #{basic_block1d.4} parent=11 // pred_fallthru
        _
      // Predicated region
      $region17: #{basic_block1d.4} parent=11 // pred_check
        %p207 = pneg %p95
      $region18: #{basic_block1d.4} parent=11 // pred_check_branch
        %209 = sbr.rel (%p207) target = $region20
      $region19: #{basic_block1d.4} parent=11 // pred_region
        _
      $region20: #{basic_block1d.4} parent=11 // pred_fallthru
        _
      // Predicated region
      $region21: #{basic_block1d.4} parent=11 // pred_check
        %p210 = pneg %p116
      $region22: #{basic_block1d.4} parent=11 // pred_check_branch
        %212 = sbr.rel (%p210) target = $region24
      $region23: #{basic_block1d.4} parent=11 // pred_region
        _
      $region24: #{basic_block1d.4} parent=11 // pred_fallthru
        _
      // Predicated region
      $region25: #{basic_block1d.4} parent=11 // pred_check
        %p213 = pneg %p137
      $region26: #{basic_block1d.4} parent=11 // pred_check_branch
        %215 = sbr.rel (%p213) target = $region28
      $region27: #{basic_block1d.4} parent=11 // pred_region
        _
      $region28: #{basic_block1d.4} parent=11 // pred_fallthru
        _
    $region12: #{basic_block1d.4} parent=5 // pred_fallthru
      _
    %p216 = scmp.lt.s32.totalorder %s13, 2
    // Predicated region
    $region29: #{basic_block1d.4} parent=5 // pred_check
      %p217 = pneg %p216
    $region30: #{basic_block1d.4} parent=5 // pred_check_branch
      %219 = sbr.rel (%p217) target = $region32
    $region31: #{basic_block1d.4} parent=5 // pred_region
      // Predicated region
      $region33: #{basic_block1d.4} parent=31 // pred_check
        %p220 = pneg %p47
      $region34: #{basic_block1d.4} parent=31 // pred_check_branch
        %222 = sbr.rel (%p220) target = $region36
      $region35: #{basic_block1d.4} parent=31 // pred_region
        %p223 = scmp.lt.s32.totalorder %s20, 1
        %s224 = scalar_select %p223, %s20, 1
        %p225 = scmp.lt.s32.totalorder %s21, 0
        %s226 = scalar_select %p225, %s21, 0
        %s227 = sadd.s32 %s226, %s224
        %s228 = smul.addr %s227, 4
        %s229 = scalar_lea.vmem %s0, %s228
      $region36: #{basic_block1d.4} parent=31 // pred_fallthru
        _
    $region32: #{basic_block1d.4} parent=5 // pred_fallthru
      _
    %p230 = scmp.le.s32.totalorder 1, %s13
    %p231 = scmp.lt.s32.totalorder %s13, 3
    %p232 = pnand %p230, %p231
    %p233 = pneg %p232
    // Predicated region
    $region37: #{basic_block1d.4} parent=5 // pred_check
      _
    $region38: #{basic_block1d.4} parent=5 // pred_check_branch
      %235 = sbr.rel (%p232) target = $region40
    $region39: #{basic_block1d.4} parent=5 // pred_region
      %s236 = ssub.s32 %s13, 1
      %p237 = scmp.lt.s32.totalorder %s22, 1
      %s238 = scalar_select %p237, %s22, 1
      %p239 = scmp.lt.s32.totalorder %s23, 0
      %s240 = scalar_select %p239, %s23, 0
      %s241 = sadd.s32 %s240, %s238
      %s242 = smul.addr %s241, 4
      %s243 = scalar_lea.vmem %s0, %s242
      %p244 = pneg %p53
      %p245 = pneg %p50
      %p246 = pneg %p74
      %p247 = pneg %p71
      %p248 = pneg %p95
      %p249 = pneg %p92
      %p250 = pneg %p116
      %p251 = pneg %p113
      %p252 = pneg %p137
      %p253 = pneg %p134
      %p254 = pneg %p163
      %p255 = pneg %p160
      %p256 = scmp.lt.s32.totalorder %s22, 1
      %s257 = scalar_select %p256, %s22, 1
      %s258 = smul.addr %s257, 4
      %s259 = scalar_lea.vmem %s5, %s258
      %p260 = pneg %p189
      %p261 = pneg %p186
      %p262 = scmp.lt.s32.totalorder %s22, 1
      %s263 = scalar_select %p262, %s22, 1
      %s264 = smul.addr %s263, 4
      %s265 = scalar_lea.vmem %s6, %s264
      %p266 = scmp.lt.s32.totalorder %s22, 1
      %s267 = scalar_select %p266, %s22, 1
      %p268 = scmp.lt.s32.totalorder %s23, 0
      %s269 = scalar_select %p268, %s23, 0
      %s270 = sadd.s32 %s269, %s267
      %s271 = smul.addr %s270, 4
      %s272 = scalar_lea.vmem %s0, %s271
      %p273 = scmp.lt.s32.totalorder %s22, 1
      %s274 = scalar_select %p273, %s22, 1
      %s275 = smul.addr %s274, 4
      %s276 = scalar_lea.vmem %s5, %s275
      %p277 = scmp.lt.s32.totalorder %s22, 1
      %s278 = scalar_select %p277, %s22, 1
      %s279 = smul.addr %s278, 4
      %s280 = scalar_lea.vmem %s6, %s279
      %p281 = scmp.eq.s32.totalorder %s23, 0
      // Predicated region
      $region41: #{basic_block1d.4} parent=39 // pred_check
        %p282 = pneg %p281
      $region42: #{basic_block1d.4} parent=39 // pred_check_branch
        %284 = sbr.rel (%p282) target = $region44
      $region43: #{basic_block1d.4} parent=39 // pred_region
        %vm285 = vcmask 3072
        %286 = vst.msk [vmem:[%s276] sm:$0xf] %vm285, 0.0
        %287 = vst.msk [vmem:[%s280] sm:$0xf] %vm285, 0.0
      $region44: #{basic_block1d.4} parent=39 // pred_fallthru
        _
      %v288 = vld [vmem:[%s1] sm:$0xf]
      %v289 = vld [vmem:[%s272] sm:$0xf]
      %vm290 = vcmask 31744
      %v292 = vsel %vm290, %v288, 0
      %vm294 = vcmask 1043456
      %v296 = vsel %vm294, %v289, 0
      %298 = vmatprep.subr.mxu0 0.0
      %299 = vmatpush1.msra.mxu0 0.0
      %300 = vmatprep.subr.mxu0 0.0
      %301 = vmatpush1.msra.mxu0 0.0
      %302 = vmatprep.subr.mxu0 0.0
      %303 = vmatpush1.msra.mxu0 0.0
      %304 = vmatprep.subr.mxu0 0.0
      %305 = vmatpush1.msra.mxu0 0.0
      %306 = vmatprep.subr.mxu0 0.0
      %307 = vmatpush1.msra.mxu0 0.0
      %308 = vmatprep.subr.mxu0 0.0
      %309 = vmatpush1.msra.mxu0 0.0
      %310 = vmatprep.subr.mxu0 0.0
      %311 = vmatpush1.msra.mxu0 0.0
      %312 = vmatprep.subr.mxu0 0.0
      %313 = vmatpush1.msra.mxu0 0.0
      %314 = vmatprep.subr.mxu0 0.0
      %315 = vmatpush1.msra.mxu0 0.0
      %316 = vmatprep.subr.mxu0 0.0
      %317 = vmatpush1.msra.mxu0 0.0
      %318 = vmatprep.subr.mxu0 0.0
      %319 = vmatpush1.msra.mxu0 0.0
      %320 = vmatprep.subr.mxu0 0.0
      %321 = vmatpush1.msra.mxu0 0.0
      %322 = vmatprep.subr.mxu0 0.0
      %323 = vmatpush1.msra.mxu0 0.0
      %324 = vmatprep.subr.mxu0 0.0
      %325 = vmatpush1.msra.mxu0 0.0
      %326 = vmatprep.subr.mxu0 0.0
      %327 = vmatpush1.msra.mxu0 0.0
      %328 = vmatprep.subr.mxu0 0.0
      %329 = vmatpush1.msra.mxu0 %v296
      %330 = vmatprep.subr.mxu0 0.0
      %331 = vmatpush2.msra.mxu0 0.0
      %332 = vmatprep.subr.mxu0 0.0
      %333 = vmatpush2.msra.mxu0 0.0
      %334 = vmatprep.subr.mxu0 0.0
      %335 = vmatpush2.msra.mxu0 0.0
      %336 = vmatprep.subr.mxu0 0.0
      %337 = vmatpush2.msra.mxu0 0.0
      %338 = vmatprep.subr.mxu0 0.0
      %339 = vmatpush2.msra.mxu0 0.0
      %340 = vmatprep.subr.mxu0 0.0
      %341 = vmatpush2.msra.mxu0 0.0
      %342 = vmatprep.subr.mxu0 0.0
      %343 = vmatpush2.msra.mxu0 0.0
      %344 = vmatprep.subr.mxu0 0.0
      %345 = vmatpush2.msra.mxu0 0.0
      %346 = vmatprep.subr.mxu0 0.0
      %347 = vmatpush2.msra.mxu0 0.0
      %348 = vmatprep.subr.mxu0 0.0
      %349 = vmatpush2.msra.mxu0 0.0
      %350 = vmatprep.subr.mxu0 0.0
      %351 = vmatpush2.msra.mxu0 0.0
      %352 = vmatprep.subr.mxu0 0.0
      %353 = vmatpush2.msra.mxu0 0.0
      %354 = vmatprep.subr.mxu0 0.0
      %355 = vmatpush2.msra.mxu0 0.0
      %356 = vmatprep.subr.mxu0 0.0
      %357 = vmatpush2.msra.mxu0 0.0
      %358 = vmatprep.subr.mxu0 0.0
      %359 = vmatpush2.msra.mxu0 0.0
      %360 = vmatprep.subr.mxu0 0.0
      %361 = vmatpush2.msra.mxu0 0.0
      %362 = vmatprep.mubr.f32.mxu0 0.0
      %363 = vmatmul.mubr.f32.gmra.mxu0 %v292
      %v364 = vpop.f32.mrf.mxu0
      %v365 = vadd.f32 0.0, %v364
      %v366 = vpop.f32.mrf.mxu0
      %367 = vdwg.mxu0
      %v368 = vld [vmem:[%s3] sm:$0xf]
      %370 = vset.pattern.permute.xlu0 0
      %371 = vperm.xlu0 %370, %v368
      %v372 = vpop.permute.xlu0 %371
      %v374 = vmul.f32 %v365, %v372
      %v375 = vld [vmem:[%s4] sm:$0xf]
      %377 = vset.pattern.permute.xlu0 0
      %378 = vperm.xlu0 %377, %v375
      %v379 = vpop.permute.xlu0 %378
      %v381 = vadd.f32 %v374, %v379
      %vm382 = vcmp.gt.f32.partialorder %v381, 0.0
      %v383 = vmul.f32 %v381, 0.01
      %v384 = vsel %vm382, %v381, %v383
      %v385 = vld [vmem:[%s2] sm:$0xf]
      %v387 = vsel %vm290, %v385, 0
      %v390 = vsel %vm294, %v384, 0
      %392 = vmatprep.subr.mxu0 0.0
      %393 = vmatpush1.msra.mxu0 0.0
      %394 = vmatprep.subr.mxu0 0.0
      %395 = vmatpush1.msra.mxu0 0.0
      %396 = vmatprep.subr.mxu0 0.0
      %397 = vmatpush1.msra.mxu0 0.0
      %398 = vmatprep.subr.mxu0 0.0
      %399 = vmatpush1.msra.mxu0 0.0
      %400 = vmatprep.subr.mxu0 0.0
      %401 = vmatpush1.msra.mxu0 0.0
      %402 = vmatprep.subr.mxu0 0.0
      %403 = vmatpush1.msra.mxu0 0.0
      %404 = vmatprep.subr.mxu0 0.0
      %405 = vmatpush1.msra.mxu0 0.0
      %406 = vmatprep.subr.mxu0 0.0
      %407 = vmatpush1.msra.mxu0 0.0
      %408 = vmatprep.subr.mxu0 0.0
      %409 = vmatpush1.msra.mxu0 0.0
      %410 = vmatprep.subr.mxu0 0.0
      %411 = vmatpush1.msra.mxu0 0.0
      %412 = vmatprep.subr.mxu0 0.0
      %413 = vmatpush1.msra.mxu0 0.0
      %414 = vmatprep.subr.mxu0 0.0
      %415 = vmatpush1.msra.mxu0 0.0
      %416 = vmatprep.subr.mxu0 0.0
      %417 = vmatpush1.msra.mxu0 0.0
      %418 = vmatprep.subr.mxu0 0.0
      %419 = vmatpush1.msra.mxu0 0.0
      %420 = vmatprep.subr.mxu0 0.0
      %421 = vmatpush1.msra.mxu0 0.0
      %422 = vmatprep.subr.mxu0 0.0
      %423 = vmatpush1.msra.mxu0 %v390
      %424 = vmatprep.subr.mxu0 0.0
      %425 = vmatpush2.msra.mxu0 0.0
      %426 = vmatprep.subr.mxu0 0.0
      %427 = vmatpush2.msra.mxu0 0.0
      %428 = vmatprep.subr.mxu0 0.0
      %429 = vmatpush2.msra.mxu0 0.0
      %430 = vmatprep.subr.mxu0 0.0
      %431 = vmatpush2.msra.mxu0 0.0
      %432 = vmatprep.subr.mxu0 0.0
      %433 = vmatpush2.msra.mxu0 0.0
      %434 = vmatprep.subr.mxu0 0.0
      %435 = vmatpush2.msra.mxu0 0.0
      %436 = vmatprep.subr.mxu0 0.0
      %437 = vmatpush2.msra.mxu0 0.0
      %438 = vmatprep.subr.mxu0 0.0
      %439 = vmatpush2.msra.mxu0 0.0
      %440 = vmatprep.subr.mxu0 0.0
      %441 = vmatpush2.msra.mxu0 0.0
      %442 = vmatprep.subr.mxu0 0.0
      %443 = vmatpush2.msra.mxu0 0.0
      %444 = vmatprep.subr.mxu0 0.0
      %445 = vmatpush2.msra.mxu0 0.0
      %446 = vmatprep.subr.mxu0 0.0
      %447 = vmatpush2.msra.mxu0 0.0
      %448 = vmatprep.subr.mxu0 0.0
      %449 = vmatpush2.msra.mxu0 0.0
      %450 = vmatprep.subr.mxu0 0.0
      %451 = vmatpush2.msra.mxu0 0.0
      %452 = vmatprep.subr.mxu0 0.0
      %453 = vmatpush2.msra.mxu0 0.0
      %454 = vmatprep.subr.mxu0 0.0
      %455 = vmatpush2.msra.mxu0 0.0
      %456 = vmatprep.mubr.f32.mxu0 0.0
      %457 = vmatmul.mubr.f32.gmra.mxu0 %v387
      %v458 = vpop.f32.mrf.mxu0
      %v459 = vadd.f32 0.0, %v458
      %v460 = vpop.f32.mrf.mxu0
      %461 = vdwg.mxu0
      %s462 = smul.u32 %s23, 128
      %v463 = vlaneseq
      %v464 = vand.u32 %v463, 127
      %v465 = vstv %s462
      %v466 = vadd.s32 %v465, %v464
      %vm467 = vcmp.lt.s32.totalorder %v466, 16
      %v468 = vsel %vm467, %v459, 0.0
      %v469 = vld [vmem:[%s276] sm:$0xf]
      %v470 = vsel %vm294, %v468, 0.0
      %471 = vadd.xlane.f32.xlu0 %v470
      %v472 = vpop.xlane.xlu0 %471
      %v473 = vadd.f32 %v469, %v472
      %vm474 = vcmask 3072
      %475 = vst.msk [vmem:[%s276] sm:$0xf] %vm474, %v473
      %v476 = vld [vmem:[%s280] sm:$0xf]
      %v477 = vmul.f32 %v468, %v468
      %v478 = vsel %vm294, %v477, 0.0
      %479 = vadd.xlane.f32.xlu0 %v478
      %v480 = vpop.xlane.xlu0 %479
      %v481 = vadd.f32 %v476, %v480
      %482 = vst.msk [vmem:[%s280] sm:$0xf] %vm474, %v481
      %p483 = scmp.lt.s32.totalorder %s22, 1
      %s484 = scalar_select %p483, %s22, 1
      %s485 = smul.addr %s484, 4
      %s486 = scalar_lea.vmem %s5, %s485
      %p487 = scmp.lt.s32.totalorder %s22, 1
      %s488 = scalar_select %p487, %s22, 1
      %s489 = smul.addr %s488, 4
      %s490 = scalar_lea.vmem %s6, %s489
      // Predicated region
      $region45: #{basic_block1d.4} parent=39 // pred_check
        %p491 = pneg %p160
      $region46: #{basic_block1d.4} parent=39 // pred_check_branch
        %493 = sbr.rel (%p491) target = $region48
      $region47: #{basic_block1d.4} parent=39 // pred_region
        _
      $region48: #{basic_block1d.4} parent=39 // pred_fallthru
        _
      // Predicated region
      $region49: #{basic_block1d.4} parent=39 // pred_check
        %p494 = pneg %p186
      $region50: #{basic_block1d.4} parent=39 // pred_check_branch
        %496 = sbr.rel (%p494) target = $region52
      $region51: #{basic_block1d.4} parent=39 // pred_region
        _
      $region52: #{basic_block1d.4} parent=39 // pred_fallthru
        _
    $region40: #{basic_block1d.4} parent=5 // pred_fallthru
      _
    %p497 = scmp.le.s32.totalorder 2, %s13
    // Predicated region
    $region53: #{basic_block1d.4} parent=5 // pred_check
      %p498 = pneg %p497
    $region54: #{basic_block1d.4} parent=5 // pred_check_branch
      %500 = sbr.rel (%p498) target = $region56
    $region55: #{basic_block1d.4} parent=5 // pred_region
      %s501 = ssub.s32 %s13, 2
      // Predicated region
      $region57: #{basic_block1d.4} parent=55 // pred_check
        %p502 = pneg %p166
      $region58: #{basic_block1d.4} parent=55 // pred_check_branch
        %504 = sbr.rel (%p502) target = $region60
      $region59: #{basic_block1d.4} parent=55 // pred_region
        %p505 = scmp.lt.s32.totalorder %s24, 1
        %s506 = scalar_select %p505, %s24, 1
        %s507 = smul.addr %s506, 4
        %s508 = scalar_lea.vmem %s5, %s507
      $region60: #{basic_block1d.4} parent=55 // pred_fallthru
        _
      // Predicated region
      $region61: #{basic_block1d.4} parent=55 // pred_check
        %p509 = pneg %p192
      $region62: #{basic_block1d.4} parent=55 // pred_check_branch
        %511 = sbr.rel (%p509) target = $region64
      $region63: #{basic_block1d.4} parent=55 // pred_region
        %p512 = scmp.lt.s32.totalorder %s24, 1
        %s513 = scalar_select %p512, %s24, 1
        %s514 = smul.addr %s513, 4
        %s515 = scalar_lea.vmem %s6, %s514
      $region64: #{basic_block1d.4} parent=55 // pred_fallthru
        _
    $region56: #{basic_block1d.4} parent=5 // pred_fallthru
      _
  $region6: #{basic_block1d.4} parent=0 // loop_footer
    %s17 = sadd.s32 1, %s13
  $region7: #{basic_block1d.4} parent=0 // loop_footer_branch
    %12 = sbr.rel target = $region3
  $region8: #{basic_block1d.4} parent=0 // loop_exit
    _

// kernel: basic_block1d.5
$region0: #{basic_block1d.5}
  #allocation0 [shape = 'u32[]', space=smem, size = 0x4, offset = 0x4, fixed_abs, tag = 'smem constant byte address 0x4 - core index']
  #allocation1 [shape = 'u32[144,128]{1,0:T(1,128)}', space=vmem, size = 0x12000, scoped, tag = 'internal scratch']
  %s0 = inlined_call_operand.vmem [shape: f32[2,4,128], index: 0, kind: input, shape index: {}]
  %s1 = inlined_call_operand.vmem [shape: f32[4,4], index: 1, kind: input, shape index: {}]
  %s2 = inlined_call_operand.vmem [shape: f32[4,4], index: 2, kind: input, shape index: {}]
  %s3 = inlined_call_operand.vmem [shape: f32[4,1], index: 3, kind: input, shape index: {}]
  %s4 = inlined_call_operand.vmem [shape: f32[4,1], index: 4, kind: input, shape index: {}]
  %s5 = inlined_call_operand.vmem [shape: f32[4,1], index: 5, kind: input, shape index: {}]
  %s6 = inlined_call_operand.vmem [shape: f32[4,1], index: 6, kind: input, shape index: {}]
  %s7 = inlined_call_operand.hbm [shape: f32[2,4,128], index: 7, kind: output, shape index: {}]
  %s8 = sld [smem:[#allocation0]]
  $region61: #{basic_block1d.5} parent=0
    _
  %s10 = ssub.s32 1, %s8
  %s11 = scalar_select 0, %s10, %s8
  $region1: #{basic_block1d.5} parent=0
    #allocation2 [shape = 'u8[4096]{0}', space=vmem, size = 0x1000, scoped, tag = 'output window, operand 0']
    #allocation3 [shape = 's32[2]{0}', space=sflag, size = 0x8, scoped, tag = 'scoped memory for basic_block1d.5']
    %12 = vsyncpa [#allocation3], 0
    %s13 = scalar_lea.sflag [#allocation3], 1
    %14 = vsyncpa %s13, 0
    loop: start=0, step=1, limit=4
    $region2: #{basic_block1d.5} parent=1 // loop_pre_header
      _
    $region3: #{basic_block1d.5} parent=1 // loop_header
      %s16 = sphi 0, %s20
      %p17 = scmp.ge.s32.totalorder %s16, 4
      %s23 = sphi 0, %s35
      %s24 = sphi 0, %s31
      %s25 = sphi 0, %s23
      %s26 = sphi 0, %s24
      %s27 = sphi 0, %s25
      %s28 = sphi 0, %s26
      %s40 = sphi 0, %s42
      %s43 = sphi 0, %s40
      %s44 = sphi 0, %s43
      %s60 = sphi 0, %s44
      %s64 = sphi 0, %s64
      %s66 = sphi 0, %s64
      %s67 = sphi 0, %s66
      %s81 = sphi 0, %s67
      %s85 = sphi 0, %s85
      %s87 = sphi 0, %s85
      %s88 = sphi 0, %s87
      %s102 = sphi 0, %s88
      %s106 = sphi 0, %s106
      %s108 = sphi 0, %s106
      %s109 = sphi 0, %s108
      %s123 = sphi 0, %s109
      %s127 = sphi 0, %s127
      %s129 = sphi 0, %s127
      %s130 = sphi 0, %s129
      %s144 = sphi 0, %s130
      %s148 = sphi 0, %s148
      %s150 = sphi 0, %s148
      %s151 = sphi 0, %s150
      %s165 = sphi 0, %s151
      %s169 = sphi 0, %s169
      %s171 = sphi 0, %s169
      %s172 = sphi 0, %s171
      %s186 = sphi 0, %s172
      %s194 = sphi 0, %s196
      %s197 = sphi 0, %s194
      %s198 = sphi 0, %s197
      %s214 = sphi 0, %s198
    $region4: #{basic_block1d.5} parent=1 // loop_header_branch
      %19 = sbr.rel (%p17) target = $region8
    $region5: #{basic_block1d.5} parent=1 // loop_body
      %s21 = ssub.s32 %s16, 1
      %s22 = ssub.s32 %s16, 2
      %s29 = sadd.s32 1, %s24
      %p30 = scmp.ge.s32.totalorder %s29, 1
      %s31 = scalar_select %p30, 0, %s29
      %s32 = sadd.s32 1, %s23
      %s33 = scalar_select %p30, %s32, %s23
      %p34 = scmp.ge.s32.totalorder %s33, 2
      %s35 = scalar_select %p34, 0, %s33
      %s36 = ssub.s32 %s23, %s35
      %s37 = ssub.s32 %s24, %s31
      %s38 = sor.u32 %s36, %s37
      %p39 = scmp.eq.s32.totalorder %s38, 0
      %s41 = sadd.s32 %s40, 1
      %s42 = scalar_select %p39, %s40, %s41
      %p45 = pneg %p39
      %p46 = scmp.eq.s32.totalorder %s16, 1
      %p47 = por %p45, %p46
      %p48 = scmp.ne.s32.totalorder %s40, %s43
      %p49 = scmp.eq.s32.totalorder %s16, 0
      %p50 = por %p48, %p49
      %p51 = scmp.ne.s32.totalorder %s40, %s43
      %p52 = scmp.eq.s32.totalorder %s21, 1
      %p53 = por %p51, %p52
      %p54 = scmp.ne.s32.totalorder %s43, %s44
      %p55 = scmp.eq.s32.totalorder %s21, 0
      %p56 = por %p54, %p55
      %p57 = scmp.ne.s32.totalorder %s43, %s44
      %p58 = scmp.eq.s32.totalorder %s22, 1
      %p59 = por %p57, %p58
      %p61 = scmp.ne.s32.totalorder %s44, %s60
      %p62 = scmp.eq.s32.totalorder %s22, 0
      %p63 = por %p61, %p62
      %s65 = sadd.s32 %s64, 1
      %p68 = scmp.eq.s32.totalorder %s16, 1
      %p69 = scmp.ne.s32.totalorder %s64, %s66
      %p70 = scmp.eq.s32.totalorder %s16, 0
      %p71 = por %p69, %p70
      %p72 = scmp.ne.s32.totalorder %s64, %s66
      %p73 = scmp.eq.s32.totalorder %s21, 1
      %p74 = por %p72, %p73
      %p75 = scmp.ne.s32.totalorder %s66, %s67
      %p76 = scmp.eq.s32.totalorder %s21, 0
      %p77 = por %p75, %p76
      %p78 = scmp.ne.s32.totalorder %s66, %s67
      %p79 = scmp.eq.s32.totalorder %s22, 1
      %p80 = por %p78, %p79
      %p82 = scmp.ne.s32.totalorder %s67, %s81
      %p83 = scmp.eq.s32.totalorder %s22, 0
      %p84 = por %p82, %p83
      %s86 = sadd.s32 %s85, 1
      %p89 = scmp.eq.s32.totalorder %s16, 1
      %p90 = scmp.ne.s32.totalorder %s85, %s87
      %p91 = scmp.eq.s32.totalorder %s16, 0
      %p92 = por %p90, %p91
      %p93 = scmp.ne.s32.totalorder %s85, %s87
      %p94 = scmp.eq.s32.totalorder %s21, 1
      %p95 = por %p93, %p94
      %p96 = scmp.ne.s32.totalorder %s87, %s88
      %p97 = scmp.eq.s32.totalorder %s21, 0
      %p98 = por %p96, %p97
      %p99 = scmp.ne.s32.totalorder %s87, %s88
      %p100 = scmp.eq.s32.totalorder %s22, 1
      %p101 = por %p99, %p100
      %p103 = scmp.ne.s32.totalorder %s88, %s102
      %p104 = scmp.eq.s32.totalorder %s22, 0
      %p105 = por %p103, %p104
      %s107 = sadd.s32 %s106, 1
      %p110 = scmp.eq.s32.totalorder %s16, 1
      %p111 = scmp.ne.s32.totalorder %s106, %s108
      %p112 = scmp.eq.s32.totalorder %s16, 0
      %p113 = por %p111, %p112
      %p114 = scmp.ne.s32.totalorder %s106, %s108
      %p115 = scmp.eq.s32.totalorder %s21, 1
      %p116 = por %p114, %p115
      %p117 = scmp.ne.s32.totalorder %s108, %s109
      %p118 = scmp.eq.s32.totalorder %s21, 0
      %p119 = por %p117, %p118
      %p120 = scmp.ne.s32.totalorder %s108, %s109
      %p121 = scmp.eq.s32.totalorder %s22, 1
      %p122 = por %p120, %p121
      %p124 = scmp.ne.s32.totalorder %s109, %s123
      %p125 = scmp.eq.s32.totalorder %s22, 0
      %p126 = por %p124, %p125
      %s128 = sadd.s32 %s127, 1
      %p131 = scmp.eq.s32.totalorder %s16, 1
      %p132 = scmp.ne.s32.totalorder %s127, %s129
      %p133 = scmp.eq.s32.totalorder %s16, 0
      %p134 = por %p132, %p133
      %p135 = scmp.ne.s32.totalorder %s127, %s129
      %p136 = scmp.eq.s32.totalorder %s21, 1
      %p137 = por %p135, %p136
      %p138 = scmp.ne.s32.totalorder %s129, %s130
      %p139 = scmp.eq.s32.totalorder %s21, 0
      %p140 = por %p138, %p139
      %p141 = scmp.ne.s32.totalorder %s129, %s130
      %p142 = scmp.eq.s32.totalorder %s22, 1
      %p143 = por %p141, %p142
      %p145 = scmp.ne.s32.totalorder %s130, %s144
      %p146 = scmp.eq.s32.totalorder %s22, 0
      %p147 = por %p145, %p146
      %s149 = sadd.s32 %s148, 1
      %p152 = scmp.eq.s32.totalorder %s16, 1
      %p153 = scmp.ne.s32.totalorder %s148, %s150
      %p154 = scmp.eq.s32.totalorder %s16, 0
      %p155 = por %p153, %p154
      %p156 = scmp.ne.s32.totalorder %s148, %s150
      %p157 = scmp.eq.s32.totalorder %s21, 1
      %p158 = por %p156, %p157
      %p159 = scmp.ne.s32.totalorder %s150, %s151
      %p160 = scmp.eq.s32.totalorder %s21, 0
      %p161 = por %p159, %p160
      %p162 = scmp.ne.s32.totalorder %s150, %s151
      %p163 = scmp.eq.s32.totalorder %s22, 1
      %p164 = por %p162, %p163
      %p166 = scmp.ne.s32.totalorder %s151, %s165
      %p167 = scmp.eq.s32.totalorder %s22, 0
      %p168 = por %p166, %p167
      %s170 = sadd.s32 %s169, 1
      %p173 = scmp.eq.s32.totalorder %s16, 1
      %p174 = scmp.ne.s32.totalorder %s169, %s171
      %p175 = scmp.eq.s32.totalorder %s16, 0
      %p176 = por %p174, %p175
      %p177 = scmp.ne.s32.totalorder %s169, %s171
      %p178 = scmp.eq.s32.totalorder %s21, 1
      %p179 = por %p177, %p178
      %p180 = scmp.ne.s32.totalorder %s171, %s172
      %p181 = scmp.eq.s32.totalorder %s21, 0
      %p182 = por %p180, %p181
      %p183 = scmp.ne.s32.totalorder %s171, %s172
      %p184 = scmp.eq.s32.totalorder %s22, 1
      %p185 = por %p183, %p184
      %p187 = scmp.ne.s32.totalorder %s172, %s186
      %p188 = scmp.eq.s32.totalorder %s22, 0
      %p189 = por %p187, %p188
      %s190 = ssub.s32 %s23, %s35
      %s191 = ssub.s32 %s24, %s31
      %s192 = sor.u32 %s190, %s191
      %p193 = scmp.eq.s32.totalorder %s192, 0
      %s195 = sadd.s32 %s194, 1
      %s196 = scalar_select %p193, %s194, %s195
      %p199 = pneg %p193
      %p200 = scmp.eq.s32.totalorder %s16, 1
      %p201 = por %p199, %p200
      %p202 = scmp.ne.s32.totalorder %s194, %s197
      %p203 = scmp.eq.s32.totalorder %s16, 0
      %p204 = por %p202, %p203
      %p205 = scmp.ne.s32.totalorder %s194, %s197
      %p206 = scmp.eq.s32.totalorder %s21, 1
      %p207 = por %p205, %p206
      %p208 = scmp.ne.s32.totalorder %s197, %s198
      %p209 = scmp.eq.s32.totalorder %s21, 0
      %p210 = por %p208, %p209
      %p211 = scmp.ne.s32.totalorder %s197, %s198
      %p212 = scmp.eq.s32.totalorder %s22, 1
      %p213 = por %p211, %p212
      %p215 = scmp.ne.s32.totalorder %s198, %s214
      %p216 = scmp.eq.s32.totalorder %s22, 0
      %p217 = por %p215, %p216
      %p218 = scmp.le.s32.totalorder 1, %s16
      %p219 = scmp.lt.s32.totalorder %s16, 3
      %p220 = pnand %p218, %p219
      %p221 = pneg %p220
      // Predicated region
      $region9: #{basic_block1d.5} parent=5 // pred_check
        _
      $region10: #{basic_block1d.5} parent=5 // pred_check_branch
        %223 = sbr.rel (%p220) target = $region12
      $region11: #{basic_block1d.5} parent=5 // pred_region
        %s224 = ssub.s32 %s16, 1
        // Predicated region
        $region13: #{basic_block1d.5} parent=11 // pred_check
          %p225 = pneg %p77
        $region14: #{basic_block1d.5} parent=11 // pred_check_branch
          %227 = sbr.rel (%p225) target = $region16
        $region15: #{basic_block1d.5} parent=11 // pred_region
          _
        $region16: #{basic_block1d.5} parent=11 // pred_fallthru
          _
        // Predicated region
        $region17: #{basic_block1d.5} parent=11 // pred_check
          %p228 = pneg %p98
        $region18: #{basic_block1d.5} parent=11 // pred_check_branch
          %230 = sbr.rel (%p228) target = $region20
        $region19: #{basic_block1d.5} parent=11 // pred_region
          _
        $region20: #{basic_block1d.5} parent=11 // pred_fallthru
          _
        // Predicated region
        $region21: #{basic_block1d.5} parent=11 // pred_check
          %p231 = pneg %p119
        $region22: #{basic_block1d.5} parent=11 // pred_check_branch
          %233 = sbr.rel (%p231) target = $region24
        $region23: #{basic_block1d.5} parent=11 // pred_region
          _
        $region24: #{basic_block1d.5} parent=11 // pred_fallthru
          _
        // Predicated region
        $region25: #{basic_block1d.5} parent=11 // pred_check
          %p234 = pneg %p140
        $region26: #{basic_block1d.5} parent=11 // pred_check_branch
          %236 = sbr.rel (%p234) target = $region28
        $region27: #{basic_block1d.5} parent=11 // pred_region
          _
        $region28: #{basic_block1d.5} parent=11 // pred_fallthru
          _
        // Predicated region
        $region29: #{basic_block1d.5} parent=11 // pred_check
          %p237 = pneg %p161
        $region30: #{basic_block1d.5} parent=11 // pred_check_branch
          %239 = sbr.rel (%p237) target = $region32
        $region31: #{basic_block1d.5} parent=11 // pred_region
          _
        $region32: #{basic_block1d.5} parent=11 // pred_fallthru
          _
        // Predicated region
        $region33: #{basic_block1d.5} parent=11 // pred_check
          %p240 = pneg %p182
        $region34: #{basic_block1d.5} parent=11 // pred_check_branch
          %242 = sbr.rel (%p240) target = $region36
        $region35: #{basic_block1d.5} parent=11 // pred_region
          _
        $region36: #{basic_block1d.5} parent=11 // pred_fallthru
          _
      $region12: #{basic_block1d.5} parent=5 // pred_fallthru
        _
      %p243 = scmp.lt.s32.totalorder %s16, 2
      // Predicated region
      $region37: #{basic_block1d.5} parent=5 // pred_check
        %p244 = pneg %p243
      $region38: #{basic_block1d.5} parent=5 // pred_check_branch
        %246 = sbr.rel (%p244) target = $region40
      $region39: #{basic_block1d.5} parent=5 // pred_region
        // Predicated region
        $region41: #{basic_block1d.5} parent=39 // pred_check
          %p247 = pneg %p50
        $region42: #{basic_block1d.5} parent=39 // pred_check_branch
          %249 = sbr.rel (%p247) target = $region44
        $region43: #{basic_block1d.5} parent=39 // pred_region
          %p250 = scmp.lt.s32.totalorder %s23, 1
          %s251 = scalar_select %p250, %s23, 1
          %p252 = scmp.lt.s32.totalorder %s24, 0
          %s253 = scalar_select %p252, %s24, 0
          %s254 = sadd.s32 %s253, %s251
          %s255 = smul.addr %s254, 4
          %s256 = scalar_lea.vmem %s0, %s255
        $region44: #{basic_block1d.5} parent=39 // pred_fallthru
          _
      $region40: #{basic_block1d.5} parent=5 // pred_fallthru
        _
      %p257 = scmp.le.s32.totalorder 1, %s16
      %p258 = scmp.lt.s32.totalorder %s16, 3
      %p259 = pnand %p257, %p258
      %p260 = pneg %p259
      // Predicated region
      $region45: #{basic_block1d.5} parent=5 // pred_check
        _
      $region46: #{basic_block1d.5} parent=5 // pred_check_branch
        %262 = sbr.rel (%p259) target = $region48
      $region47: #{basic_block1d.5} parent=5 // pred_region
        %s263 = ssub.s32 %s16, 1
        %p264 = scmp.lt.s32.totalorder %s25, 1
        %s265 = scalar_select %p264, %s25, 1
        %p266 = scmp.lt.s32.totalorder %s26, 0
        %s267 = scalar_select %p266, %s26, 0
        %s268 = sadd.s32 %s267, %s265
        %s269 = smul.addr %s268, 4
        %s270 = scalar_lea.vmem %s0, %s269
        %p271 = pneg %p56
        %p272 = pneg %p53
        %p273 = pneg %p77
        %p274 = pneg %p74
        %p275 = pneg %p98
        %p276 = pneg %p95
        %p277 = pneg %p119
        %p278 = pneg %p116
        %p279 = pneg %p140
        %p280 = pneg %p137
        %p281 = pneg %p161
        %p282 = pneg %p158
        %p283 = pneg %p182
        %p284 = pneg %p179
        %p285 = pneg %p210
        %p286 = pneg %p207
        %s287 = sand.u32 %s197, 1
        %s288 = scalar_lea.sflag [#allocation3], %s287
        %s289 = sand.u32 %s197, 1
        %s290 = smul.addr %s289, 4
        %s291 = scalar_lea.vmem [#allocation2], %s290
        %p292 = scmp.lt.s32.totalorder %s25, 1
        %s293 = scalar_select %p292, %s25, 1
        %p294 = scmp.lt.s32.totalorder %s26, 0
        %s295 = scalar_select %p294, %s26, 0
        %s296 = sadd.s32 %s295, %s293
        %s297 = smul.addr %s296, 4
        %s298 = scalar_lea.vmem %s0, %s297
        %v299 = vld [vmem:[%s298] sm:$0xf]
        %v300 = vld [vmem:[%s1] sm:$0xf]
        %vm301 = vcmask 31744
        %v303 = vsel %vm301, %v300, 0
        %vm305 = vcmask 1043456
        %v307 = vsel %vm305, %v299, 0
        %309 = vmatprep.subr.mxu0 0.0
        %310 = vmatpush1.msra.mxu0 0.0
        %311 = vmatprep.subr.mxu0 0.0
        %312 = vmatpush1.msra.mxu0 0.0
        %313 = vmatprep.subr.mxu0 0.0
        %314 = vmatpush1.msra.mxu0 0.0
        %315 = vmatprep.subr.mxu0 0.0
        %316 = vmatpush1.msra.mxu0 0.0
        %317 = vmatprep.subr.mxu0 0.0
        %318 = vmatpush1.msra.mxu0 0.0
        %319 = vmatprep.subr.mxu0 0.0
        %320 = vmatpush1.msra.mxu0 0.0
        %321 = vmatprep.subr.mxu0 0.0
        %322 = vmatpush1.msra.mxu0 0.0
        %323 = vmatprep.subr.mxu0 0.0
        %324 = vmatpush1.msra.mxu0 0.0
        %325 = vmatprep.subr.mxu0 0.0
        %326 = vmatpush1.msra.mxu0 0.0
        %327 = vmatprep.subr.mxu0 0.0
        %328 = vmatpush1.msra.mxu0 0.0
        %329 = vmatprep.subr.mxu0 0.0
        %330 = vmatpush1.msra.mxu0 0.0
        %331 = vmatprep.subr.mxu0 0.0
        %332 = vmatpush1.msra.mxu0 0.0
        %333 = vmatprep.subr.mxu0 0.0
        %334 = vmatpush1.msra.mxu0 0.0
        %335 = vmatprep.subr.mxu0 0.0
        %336 = vmatpush1.msra.mxu0 0.0
        %337 = vmatprep.subr.mxu0 0.0
        %338 = vmatpush1.msra.mxu0 0.0
        %339 = vmatprep.subr.mxu0 0.0
        %340 = vmatpush1.msra.mxu0 %v307
        %341 = vmatprep.subr.mxu0 0.0
        %342 = vmatpush2.msra.mxu0 0.0
        %343 = vmatprep.subr.mxu0 0.0
        %344 = vmatpush2.msra.mxu0 0.0
        %345 = vmatprep.subr.mxu0 0.0
        %346 = vmatpush2.msra.mxu0 0.0
        %347 = vmatprep.subr.mxu0 0.0
        %348 = vmatpush2.msra.mxu0 0.0
        %349 = vmatprep.subr.mxu0 0.0
        %350 = vmatpush2.msra.mxu0 0.0
        %351 = vmatprep.subr.mxu0 0.0
        %352 = vmatpush2.msra.mxu0 0.0
        %353 = vmatprep.subr.mxu0 0.0
        %354 = vmatpush2.msra.mxu0 0.0
        %355 = vmatprep.subr.mxu0 0.0
        %356 = vmatpush2.msra.mxu0 0.0
        %357 = vmatprep.subr.mxu0 0.0
        %358 = vmatpush2.msra.mxu0 0.0
        %359 = vmatprep.subr.mxu0 0.0
        %360 = vmatpush2.msra.mxu0 0.0
        %361 = vmatprep.subr.mxu0 0.0
        %362 = vmatpush2.msra.mxu0 0.0
        %363 = vmatprep.subr.mxu0 0.0
        %364 = vmatpush2.msra.mxu0 0.0
        %365 = vmatprep.subr.mxu0 0.0
        %366 = vmatpush2.msra.mxu0 0.0
        %367 = vmatprep.subr.mxu0 0.0
        %368 = vmatpush2.msra.mxu0 0.0
        %369 = vmatprep.subr.mxu0 0.0
        %370 = vmatpush2.msra.mxu0 0.0
        %371 = vmatprep.subr.mxu0 0.0
        %372 = vmatpush2.msra.mxu0 0.0
        %373 = vmatprep.mubr.f32.mxu0 0.0
        %374 = vmatmul.mubr.f32.gmra.mxu0 %v303
        %v375 = vpop.f32.mrf.mxu0
        %v376 = vadd.f32 0.0, %v375
        %v377 = vpop.f32.mrf.mxu0
        %378 = vdwg.mxu0
        %v379 = vld [vmem:[%s3] sm:$0xf]
        %381 = vset.pattern.permute.xlu0 0
        %382 = vperm.xlu0 %381, %v379
        %v383 = vpop.permute.xlu0 %382
        %v385 = vmul.f32 %v376, %v383
        %v386 = vld [vmem:[%s4] sm:$0xf]
        %388 = vset.pattern.permute.xlu0 0
        %389 = vperm.xlu0 %388, %v386
        %v390 = vpop.permute.xlu0 %389
        %v392 = vadd.f32 %v385, %v390
        %vm393 = vcmp.gt.f32.partialorder %v392, 0.0
        %v394 = vmul.f32 %v392, 0.01
        %v395 = vsel %vm393, %v392, %v394
        %v396 = vld [vmem:[%s2] sm:$0xf]
        %v398 = vsel %vm301, %v396, 0
        %v401 = vsel %vm305, %v395, 0
        %403 = vmatprep.subr.mxu0 0.0
        %404 = vmatpush1.msra.mxu0 0.0
        %405 = vmatprep.subr.mxu0 0.0
        %406 = vmatpush1.msra.mxu0 0.0
        %407 = vmatprep.subr.mxu0 0.0
        %408 = vmatpush1.msra.mxu0 0.0
        %409 = vmatprep.subr.mxu0 0.0
        %410 = vmatpush1.msra.mxu0 0.0
        %411 = vmatprep.subr.mxu0 0.0
        %412 = vmatpush1.msra.mxu0 0.0
        %413 = vmatprep.subr.mxu0 0.0
        %414 = vmatpush1.msra.mxu0 0.0
        %415 = vmatprep.subr.mxu0 0.0
        %416 = vmatpush1.msra.mxu0 0.0
        %417 = vmatprep.subr.mxu0 0.0
        %418 = vmatpush1.msra.mxu0 0.0
        %419 = vmatprep.subr.mxu0 0.0
        %420 = vmatpush1.msra.mxu0 0.0
        %421 = vmatprep.subr.mxu0 0.0
        %422 = vmatpush1.msra.mxu0 0.0
        %423 = vmatprep.subr.mxu0 0.0
        %424 = vmatpush1.msra.mxu0 0.0
        %425 = vmatprep.subr.mxu0 0.0
        %426 = vmatpush1.msra.mxu0 0.0
        %427 = vmatprep.subr.mxu0 0.0
        %428 = vmatpush1.msra.mxu0 0.0
        %429 = vmatprep.subr.mxu0 0.0
        %430 = vmatpush1.msra.mxu0 0.0
        %431 = vmatprep.subr.mxu0 0.0
        %432 = vmatpush1.msra.mxu0 0.0
        %433 = vmatprep.subr.mxu0 0.0
        %434 = vmatpush1.msra.mxu0 %v401
        %435 = vmatprep.subr.mxu0 0.0
        %436 = vmatpush2.msra.mxu0 0.0
        %437 = vmatprep.subr.mxu0 0.0
        %438 = vmatpush2.msra.mxu0 0.0
        %439 = vmatprep.subr.mxu0 0.0
        %440 = vmatpush2.msra.mxu0 0.0
        %441 = vmatprep.subr.mxu0 0.0
        %442 = vmatpush2.msra.mxu0 0.0
        %443 = vmatprep.subr.mxu0 0.0
        %444 = vmatpush2.msra.mxu0 0.0
        %445 = vmatprep.subr.mxu0 0.0
        %446 = vmatpush2.msra.mxu0 0.0
        %447 = vmatprep.subr.mxu0 0.0
        %448 = vmatpush2.msra.mxu0 0.0
        %449 = vmatprep.subr.mxu0 0.0
        %450 = vmatpush2.msra.mxu0 0.0
        %451 = vmatprep.subr.mxu0 0.0
        %452 = vmatpush2.msra.mxu0 0.0
        %453 = vmatprep.subr.mxu0 0.0
        %454 = vmatpush2.msra.mxu0 0.0
        %455 = vmatprep.subr.mxu0 0.0
        %456 = vmatpush2.msra.mxu0 0.0
        %457 = vmatprep.subr.mxu0 0.0
        %458 = vmatpush2.msra.mxu0 0.0
        %459 = vmatprep.subr.mxu0 0.0
        %460 = vmatpush2.msra.mxu0 0.0
        %461 = vmatprep.subr.mxu0 0.0
        %462 = vmatpush2.msra.mxu0 0.0
        %463 = vmatprep.subr.mxu0 0.0
        %464 = vmatpush2.msra.mxu0 0.0
        %465 = vmatprep.subr.mxu0 0.0
        %466 = vmatpush2.msra.mxu0 0.0
        %467 = vmatprep.mubr.f32.mxu0 0.0
        %468 = vmatmul.mubr.f32.gmra.mxu0 %v398
        %v469 = vpop.f32.mrf.mxu0
        %v470 = vadd.f32 0.0, %v469
        %v471 = vpop.f32.mrf.mxu0
        %472 = vdwg.mxu0
        %v473 = vld [vmem:[%s5] sm:$0xf]
        %475 = vset.pattern.permute.xlu0 0
        %476 = vperm.xlu0 %475, %v473
        %v477 = vpop.permute.xlu0 %476
        %v479 = vmul.f32 %v470, %v477
        %v480 = vld [vmem:[%s6] sm:$0xf]
        %482 = vset.pattern.permute.xlu0 0
        %483 = vperm.xlu0 %482, %v480
        %v484 = vpop.permute.xlu0 %483
        %v486 = vadd.f32 %v479, %v484
        %v487 = vadd.f32 %v486, %v299
        %vm488 = vcmp.gt.f32.partialorder %v487, 0.0
        %v489 = vmul.f32 %v487, 0.01
        %v490 = vsel %vm488, %v487, %v489
        %491 = vst [vmem:[%s291] sm:$0xf] %v490
        %s492 = sand.u32 %s197, 1
        %s493 = scalar_lea.sflag [#allocation3], %s492
        %s494 = sand.u32 %s197, 1
        %s495 = smul.addr %s494, 4
        %s496 = scalar_lea.vmem [#allocation2], %s495
        // Predicated region
        $region49: #{basic_block1d.5} parent=47 // pred_check
          %p497 = pneg %p207
        $region50: #{basic_block1d.5} parent=47 // pred_check_branch
          %499 = sbr.rel (%p497) target = $region52
        $region51: #{basic_block1d.5} parent=47 // pred_region
          %s501 = ssub.s32 64, 64
          %502 = vsyncadd %s493, %s501
          %s503 = sadd.s32 %s26, %s25
          %s504 = smul.addr %s503, 64
          %s505 = scalar_lea.hbm %s7, %s504
          %s507 = sshll.u32 %s496, 4
          %s508 = int_to_ptr.vmem [resolvable:$true] %s507
          %510 = dma.vmem_to_hbm [thread:$0]  %s508, 64, %s505, %s493
        $region52: #{basic_block1d.5} parent=47 // pred_fallthru
          _
      $region48: #{basic_block1d.5} parent=5 // pred_fallthru
        _
      %p511 = scmp.le.s32.totalorder 2, %s16
      // Predicated region
      $region53: #{basic_block1d.5} parent=5 // pred_check
        %p512 = pneg %p511
      $region54: #{basic_block1d.5} parent=5 // pred_check_branch
        %514 = sbr.rel (%p512) target = $region56
      $region55: #{basic_block1d.5} parent=5 // pred_region
        %s515 = ssub.s32 %s16, 2
        // Predicated region
        $region57: #{basic_block1d.5} parent=55 // pred_check
          %p516 = pneg %p213
        $region58: #{basic_block1d.5} parent=55 // pred_check_branch
          %518 = sbr.rel (%p516) target = $region60
        $region59: #{basic_block1d.5} parent=55 // pred_region
          %s519 = sand.u32 %s198, 1
          %s520 = scalar_lea.sflag [#allocation3], %s519
          %s521 = sand.u32 %s198, 1
          %s522 = smul.addr %s521, 4
          %s523 = scalar_lea.vmem [#allocation2], %s522
          %524 = dma.done %s520, 64
        $region60: #{basic_block1d.5} parent=55 // pred_fallthru
          _
      $region56: #{basic_block1d.5} parent=5 // pred_fallthru
        _
    $region6: #{basic_block1d.5} parent=1 // loop_footer
      %s20 = sadd.s32 1, %s16
    $region7: #{basic_block1d.5} parent=1 // loop_footer_branch
      %15 = sbr.rel target = $region3
    $region8: #{basic_block1d.5} parent=1 // loop_exit
      _
    %525 = vsyncpa [#allocation3], 1
    %s526 = scalar_lea.sflag [#allocation3], 1
    %527 = vsyncpa %s526, 1

</llo_original>
